<compile_context>
chip_gen: v7x
topology: tpu7x:2x2x1
jax: 0.10.0
libtpu: 0.0.40
codegen_flags: <defaults>
</compile_context>

<pallas_src>
import math

import jax
import jax.numpy as jnp
from jax import lax
from jax.experimental import pallas as pl
from jax.experimental.pallas import tpu as pltpu

D_MODEL = 64
AGENT_SIZE = 10
N_AGENTS = 8

# ------------------------------------------------------------------ param-slab layout
SLAB_COLS = 128                                # exactly one f32 vreg wide

# per-GraphConv block (row offsets relative to the conv base row)
_WQ_R, _WK_R, _WV_R = 0, 64, 128               # (64,64) each; 1/sqrt(d) folded into WQ
_WDEC_R = 192                                  # (128,64) = [W_top ; Wo @ W_bot]
_BQ_R, _BK_R, _BV_R, _BCOMB_R = 320, 328, 336, 344   # (8,64) pre-broadcast biases
CONV_ROWS = 352

W1_R = 2 * CONV_ROWS                           # (192,128) fc_1 weight
W2_R = W1_R + 3 * D_MODEL                      # (128,10)  fc_2 weight (cols 0:10)
B1_R = W2_R + 128                              # (8,128)   fc_1 bias (pre-broadcast)
B2_R = B1_R + N_AGENTS                         # (8,10)    fc_2 bias (pre-broadcast)
SLAB_ROWS = B2_R + N_AGENTS                    # 1040

# advisory cost estimate (per graph)
_FLOPS_PER_GRAPH = 1_101_824                   # 2 * total MACs of all matmuls
_TRANS_PER_GRAPH = 2 * N_AGENTS * N_AGENTS + N_AGENTS * AGENT_SIZE   # exp() count
_SLAB_BYTES = SLAB_ROWS * SLAB_COLS * 4
_IO_BYTES_PER_GRAPH = (N_AGENTS * D_MODEL + N_AGENTS * AGENT_SIZE) * 4


# ----------------------------------------------------------------------------- kernel
def _graph_conv(x, slab, base):
    """One GraphConv: single-head SDPA (Wo folded into the decoder) + relu(o_linear)."""
    d = D_MODEL
    n = N_AGENTS
    wq = slab[base + _WQ_R:base + _WQ_R + d, 0:d]
    wk = slab[base + _WK_R:base + _WK_R + d, 0:d]
    wv = slab[base + _WV_R:base + _WV_R + d, 0:d]
    wdec = slab[base + _WDEC_R:base + _WDEC_R + 2 * d, 0:d]
    bq = slab[base + _BQ_R:base + _BQ_R + n, 0:d]
    bk = slab[base + _BK_R:base + _BK_R + n, 0:d]
    bv = slab[base + _BV_R:base + _BV_R + n, 0:d]
    bcomb = slab[base + _BCOMB_R:base + _BCOMB_R + n, 0:d]

    # Three standalone (64,64) projections: lane-aligned outputs, no value slicing.
    q = jnp.dot(x, wq, preferred_element_type=jnp.float32) + bq    # scale folded in
    k = jnp.dot(x, wk, preferred_element_type=jnp.float32) + bk
    v = jnp.dot(x, wv, preferred_element_type=jnp.float32) + bv

    # q @ k^T via dot_general so the MXU consumes k transposed (no XLU transpose).
    scores = lax.dot_general(q, k, (((1,), (1,)), ((), ())),
                             preferred_element_type=jnp.float32)   # (N, N)
    m = jnp.max(scores, axis=-1, keepdims=True)
    e = jnp.exp(scores - m)
    attn = e / jnp.sum(e, axis=-1, keepdims=True)                  # exact (tiny 8x8)
    ctx = jnp.dot(attn, v, preferred_element_type=jnp.float32)     # (N, D)

    # relu(o_linear(cat(x_in, attn_out))): cat(x, ctx) is exactly one 128-lane vreg,
    # multiplied by the host-stacked [W_top ; Wo @ W_bot] -> one K=128 matmul.
    xc = jnp.concatenate([x, ctx], axis=-1)                        # (N, 2D)
    pre = jnp.dot(xc, wdec, preferred_element_type=jnp.float32) + bcomb
    return jnp.maximum(pre, 0.0)


def adjacency_kernel(z_ref, slab_ref, adj_ref):
    d = D_MODEL
    n = N_AGENTS
    z = z_ref[...]                                                 # (N, D)

    h1 = _graph_conv(z, slab_ref, 0)
    h2 = _graph_conv(h1, slab_ref, CONV_ROWS)

    # fc_1 on cat(z, h1, h2): split matmuls, sequentially accumulated into one value.
    acc = jnp.dot(z, slab_ref[W1_R:W1_R + d, :], preferred_element_type=jnp.float32)
    acc = acc + jnp.dot(h1, slab_ref[W1_R + d:W1_R + 2 * d, :],
                        preferred_element_type=jnp.float32)
    acc = acc + jnp.dot(h2, slab_ref[W1_R + 2 * d:W1_R + 3 * d, :],
                        preferred_element_type=jnp.float32)
    acc = acc + slab_ref[B1_R:B1_R + n, :]
    a = jnp.maximum(acc, 0.0)                                      # (N, 128)

    logits = (jnp.dot(a, slab_ref[W2_R:W2_R + 128, 0:AGENT_SIZE],
                      preferred_element_type=jnp.float32)
              + slab_ref[B2_R:B2_R + n, 0:AGENT_SIZE])             # (N, 10)

    # softmax(dim=-1) then (p < 0.1 -> 0, p >= 0.1 -> 1), without the divide.
    m = jnp.max(logits, axis=-1, keepdims=True)
    e = jnp.exp(logits - m)
    thresh = 0.1 * jnp.sum(e, axis=-1, keepdims=True)
    adj_ref[...] = jnp.where(e >= thresh, 1.0, 0.0).astype(adj_ref.dtype)


# ---------------------------------------------------------------------------- wrappers
_VMEM_SPEC = pl.BlockSpec(memory_space=pltpu.MemorySpace.VMEM)


@jax.jit
def adjacency_net(z, slab):
    """Single graph: z (N_AGENTS, D_MODEL) -> adjacency (N_AGENTS, AGENT_SIZE)."""
    return pl.pallas_call(
        adjacency_kernel,
        in_specs=[_VMEM_SPEC, _VMEM_SPEC],
        out_specs=_VMEM_SPEC,
        out_shape=jax.ShapeDtypeStruct((N_AGENTS, AGENT_SIZE), jnp.float32),
        cost_estimate=pl.CostEstimate(
            flops=_FLOPS_PER_GRAPH,
            transcendentals=_TRANS_PER_GRAPH,
            bytes_accessed=_SLAB_BYTES + _IO_BYTES_PER_GRAPH),
    )(z, slab)


@jax.jit
def adjacency_net_batched(z_batch, slab):
    """Many independent graphs: z (B, N_AGENTS, D_MODEL).  'parallel' grid over B so
    v7x can shard graphs across its two TensorCores; the weight slab's block index is
    constant so it stays VMEM-resident across grid steps (no per-graph re-DMA)."""
    b = z_batch.shape[0]
    return pl.pallas_call(
        adjacency_kernel,
        grid=(b,),
        in_specs=[
            pl.BlockSpec((None, N_AGENTS, D_MODEL), lambda i: (i, 0, 0)),
            pl.BlockSpec((SLAB_ROWS, SLAB_COLS), lambda i: (0, 0)),
        ],
        out_specs=pl.BlockSpec((None, N_AGENTS, AGENT_SIZE), lambda i: (i, 0, 0)),
        out_shape=jax.ShapeDtypeStruct((b, N_AGENTS, AGENT_SIZE), jnp.float32),
        compiler_params=pltpu.CompilerParams(dimension_semantics=("parallel",)),
        cost_estimate=pl.CostEstimate(
            flops=b * _FLOPS_PER_GRAPH,
            transcendentals=b * _TRANS_PER_GRAPH,
            bytes_accessed=_SLAB_BYTES + b * _IO_BYTES_PER_GRAPH),
    )(z_batch, slab)


# ------------------------------------------------------------------------------ params
def _uniform(key, shape, fan_in):
    bound = 1.0 / math.sqrt(fan_in)
    return jax.random.uniform(key, shape, jnp.float32, -bound, bound)


def init_raw_params(key):
    """Parameters in the natural (torch-like) layout, weights stored (in, out)."""
    keys = iter(jax.random.split(key, 32))

    def graphconv_raw():
        wq, wk, wv, wo = (_uniform(next(keys), (D_MODEL, D_MODEL), D_MODEL)
                          for _ in range(4))
        bq, bk, bv, bo = (_uniform(next(keys), (D_MODEL,), D_MODEL) for _ in range(4))
        w_ol = _uniform(next(keys), (2 * D_MODEL, D_MODEL), 2 * D_MODEL)   # (128, 64)
        b_ol = _uniform(next(keys), (D_MODEL,), 2 * D_MODEL)
        return dict(wq=wq, wk=wk, wv=wv, wo=wo, bq=bq, bk=bk, bv=bv, bo=bo,
                    w_ol=w_ol, b_ol=b_ol)

    conv1 = graphconv_raw()
    conv2 = graphconv_raw()
    w1 = _uniform(next(keys), (3 * D_MODEL, 128), 3 * D_MODEL)             # (192, 128)
    b1 = _uniform(next(keys), (128,), 3 * D_MODEL)
    w2 = _uniform(next(keys), (128, AGENT_SIZE), 128)                      # (128, 10)
    b2 = _uniform(next(keys), (AGENT_SIZE,), 128)
    return dict(conv1=conv1, conv2=conv2, adj=dict(w1=w1, b1=b1, w2=w2, b2=b2))


def build_param_slab(raw):
    """Host-side folding + packing into one lane-dense (SLAB_ROWS, 128) f32 slab."""
    scale = 1.0 / math.sqrt(D_MODEL)

    def pad_cols(a):
        return jnp.pad(a, ((0, 0), (0, SLAB_COLS - a.shape[1])))

    def bcast(v):
        return jnp.broadcast_to(v[None, :], (N_AGENTS, v.shape[0]))

    def conv_blocks(p):
        w_top = p["w_ol"][:D_MODEL, :]
        w_bot = p["w_ol"][D_MODEL:, :]
        return [
            p["wq"] * scale,                                  # WQ  (scale folded)
            p["wk"], p["wv"],                                 # WK, WV
            jnp.concatenate([w_top, p["wo"] @ w_bot], 0),     # WDEC = [W_top; Wo@W_bot]
            bcast(p["bq"] * scale), bcast(p["bk"]), bcast(p["bv"]),
            bcast(p["b_ol"] + p["bo"] @ w_bot),               # BCOMB
        ]

    adj = raw["adj"]
    blocks = (conv_blocks(raw["conv1"]) + conv_blocks(raw["conv2"])
              + [adj["w1"], adj["w2"], bcast(adj["b1"]), bcast(adj["b2"])])
    slab = jnp.concatenate([pad_cols(b.astype(jnp.float32)) for b in blocks], axis=0)
    assert slab.shape == (SLAB_ROWS, SLAB_COLS)
    return slab


# -------------------------------------------------------------------------------- main
if __name__ == "__main__":
    key = jax.random.PRNGKey(0)
    pkey, zkey = jax.random.split(key)
    slab = build_param_slab(init_raw_params(pkey))

    # z: (N_agents, d_model) = (8, 64)
    z = jax.random.normal(zkey, (N_AGENTS, D_MODEL), jnp.float32)

    adj = jax.block_until_ready(adjacency_net(z, slab))
    assert adj.shape == (N_AGENTS, AGENT_SIZE)
    assert bool(jnp.all((adj == 0.0) | (adj == 1.0)))

    # Batched ("parallel" grid) path: 4 graphs, graph 0 == z; must match per-graph call.
    zb = jax.random.normal(jax.random.PRNGKey(1), (4, N_AGENTS, D_MODEL), jnp.float32)
    zb = zb.at[0].set(z)
    adj_b = jax.block_until_ready(adjacency_net_batched(zb, slab))
    assert adj_b.shape == (4, N_AGENTS, AGENT_SIZE)
    assert bool(jnp.all((adj_b == 0.0) | (adj_b == 1.0)))
    assert bool(jnp.all(adj_b[0] == adj))

    print("KERNEL_OK")
</pallas_src>

<mosaic_0001>
module attributes {stable_mosaic.version = 11 : i64} {
  func.func @adjacency_kernel(%arg0: memref<8x64xf32, #tpu.memory_space<vmem>>, %arg1: memref<1040x128xf32, #tpu.memory_space<vmem>>, %arg2: memref<8x10xf32, #tpu.memory_space<vmem>>) attributes {dimension_semantics = [], scalar_prefetch = 0 : i64, scratch_operands = 0 : i64, tpu.core_type = #tpu.core_type<tc>} {
    %c0 = arith.constant 0 : index
    %c0_0 = arith.constant 0 : index
    %0 = vector.load %arg0[%c0, %c0_0] : memref<8x64xf32, #tpu.memory_space<vmem>>, vector<8x64xf32>
    %c0_1 = arith.constant 0 : index
    %c0_2 = arith.constant 0 : index
    %1 = vector.load %arg1[%c0_1, %c0_2] : memref<1040x128xf32, #tpu.memory_space<vmem>>, vector<64x64xf32>
    %c64 = arith.constant 64 : index
    %c0_3 = arith.constant 0 : index
    %2 = vector.load %arg1[%c64, %c0_3] : memref<1040x128xf32, #tpu.memory_space<vmem>>, vector<64x64xf32>
    %c128 = arith.constant 128 : index
    %c0_4 = arith.constant 0 : index
    %3 = vector.load %arg1[%c128, %c0_4] : memref<1040x128xf32, #tpu.memory_space<vmem>>, vector<64x64xf32>
    %c192 = arith.constant 192 : index
    %c0_5 = arith.constant 0 : index
    %4 = vector.load %arg1[%c192, %c0_5] : memref<1040x128xf32, #tpu.memory_space<vmem>>, vector<128x64xf32>
    %c320 = arith.constant 320 : index
    %c0_6 = arith.constant 0 : index
    %5 = vector.load %arg1[%c320, %c0_6] : memref<1040x128xf32, #tpu.memory_space<vmem>>, vector<8x64xf32>
    %c328 = arith.constant 328 : index
    %c0_7 = arith.constant 0 : index
    %6 = vector.load %arg1[%c328, %c0_7] : memref<1040x128xf32, #tpu.memory_space<vmem>>, vector<8x64xf32>
    %c336 = arith.constant 336 : index
    %c0_8 = arith.constant 0 : index
    %7 = vector.load %arg1[%c336, %c0_8] : memref<1040x128xf32, #tpu.memory_space<vmem>>, vector<8x64xf32>
    %c344 = arith.constant 344 : index
    %c0_9 = arith.constant 0 : index
    %8 = vector.load %arg1[%c344, %c0_9] : memref<1040x128xf32, #tpu.memory_space<vmem>>, vector<8x64xf32>
    %cst = arith.constant dense<0.000000e+00> : vector<8x64xf32>
    %9 = tpu.matmul %0, %1, %cst {dimension_numbers = #tpu.dot_dimension_numbers<[1], [0], [0], [1], [0, 0, 1, 1], [], []>} : vector<8x64xf32>, vector<64x64xf32>, vector<8x64xf32> -> vector<8x64xf32>
    %10 = arith.addf %9, %5 : vector<8x64xf32>
    %cst_10 = arith.constant dense<0.000000e+00> : vector<8x64xf32>
    %11 = tpu.matmul %0, %2, %cst_10 {dimension_numbers = #tpu.dot_dimension_numbers<[1], [0], [0], [1], [0, 0, 1, 1], [], []>} : vector<8x64xf32>, vector<64x64xf32>, vector<8x64xf32> -> vector<8x64xf32>
    %12 = arith.addf %11, %6 : vector<8x64xf32>
    %cst_11 = arith.constant dense<0.000000e+00> : vector<8x64xf32>
    %13 = tpu.matmul %0, %3, %cst_11 {dimension_numbers = #tpu.dot_dimension_numbers<[1], [0], [0], [1], [0, 0, 1, 1], [], []>} : vector<8x64xf32>, vector<64x64xf32>, vector<8x64xf32> -> vector<8x64xf32>
    %14 = arith.addf %13, %7 : vector<8x64xf32>
    %cst_12 = arith.constant dense<0.000000e+00> : vector<8x8xf32>
    %15 = tpu.matmul %10, %12, %cst_12 {dimension_numbers = #tpu.dot_dimension_numbers<[1], [1], [0], [0], [0, 0, 1, 0], [], []>} : vector<8x64xf32>, vector<8x64xf32>, vector<8x8xf32> -> vector<8x8xf32>
    %cst_13 = arith.constant dense<0xFF800000> : vector<8xf32>
    %16 = vector.multi_reduction <maximumf>, %15, %cst_13 [1] : vector<8x8xf32> to vector<8xf32>
    %17 = vector.shape_cast %16 : vector<8xf32> to vector<8x1xf32>
    %18 = vector.broadcast %17 : vector<8x1xf32> to vector<8x8xf32>
    %19 = arith.subf %15, %18 : vector<8x8xf32>
    %20 = math.exp %19 : vector<8x8xf32>
    %cst_14 = arith.constant dense<0.000000e+00> : vector<8xf32>
    %21 = vector.multi_reduction <add>, %20, %cst_14 [1] : vector<8x8xf32> to vector<8xf32>
    %22 = vector.shape_cast %21 : vector<8xf32> to vector<8x1xf32>
    %23 = vector.broadcast %22 : vector<8x1xf32> to vector<8x8xf32>
    %24 = arith.divf %20, %23 : vector<8x8xf32>
    %cst_15 = arith.constant dense<0.000000e+00> : vector<8x64xf32>
    %25 = tpu.matmul %24, %14, %cst_15 {dimension_numbers = #tpu.dot_dimension_numbers<[1], [0], [0], [1], [0, 0, 1, 1], [], []>} : vector<8x8xf32>, vector<8x64xf32>, vector<8x64xf32> -> vector<8x64xf32>
    %26 = tpu.concatenate %0, %25 in 1 : vector<8x64xf32>, vector<8x64xf32> -> vector<8x128xf32>
    %cst_16 = arith.constant dense<0.000000e+00> : vector<8x64xf32>
    %27 = tpu.matmul %26, %4, %cst_16 {dimension_numbers = #tpu.dot_dimension_numbers<[1], [0], [0], [1], [0, 0, 1, 1], [], []>} : vector<8x128xf32>, vector<128x64xf32>, vector<8x64xf32> -> vector<8x64xf32>
    %28 = arith.addf %27, %8 : vector<8x64xf32>
    %cst_17 = arith.constant 0.000000e+00 : f32
    %29 = vector.broadcast %cst_17 : f32 to vector<8x64xf32>
    %30 = arith.maximumf %28, %29 : vector<8x64xf32>
    %c352 = arith.constant 352 : index
    %c0_18 = arith.constant 0 : index
    %31 = vector.load %arg1[%c352, %c0_18] : memref<1040x128xf32, #tpu.memory_space<vmem>>, vector<64x64xf32>
    %c416 = arith.constant 416 : index
    %c0_19 = arith.constant 0 : index
    %32 = vector.load %arg1[%c416, %c0_19] : memref<1040x128xf32, #tpu.memory_space<vmem>>, vector<64x64xf32>
    %c480 = arith.constant 480 : index
    %c0_20 = arith.constant 0 : index
    %33 = vector.load %arg1[%c480, %c0_20] : memref<1040x128xf32, #tpu.memory_space<vmem>>, vector<64x64xf32>
    %c544 = arith.constant 544 : index
    %c0_21 = arith.constant 0 : index
    %34 = vector.load %arg1[%c544, %c0_21] : memref<1040x128xf32, #tpu.memory_space<vmem>>, vector<128x64xf32>
    %c672 = arith.constant 672 : index
    %c0_22 = arith.constant 0 : index
    %35 = vector.load %arg1[%c672, %c0_22] : memref<1040x128xf32, #tpu.memory_space<vmem>>, vector<8x64xf32>
    %c680 = arith.constant 680 : index
    %c0_23 = arith.constant 0 : index
    %36 = vector.load %arg1[%c680, %c0_23] : memref<1040x128xf32, #tpu.memory_space<vmem>>, vector<8x64xf32>
    %c688 = arith.constant 688 : index
    %c0_24 = arith.constant 0 : index
    %37 = vector.load %arg1[%c688, %c0_24] : memref<1040x128xf32, #tpu.memory_space<vmem>>, vector<8x64xf32>
    %c696 = arith.constant 696 : index
    %c0_25 = arith.constant 0 : index
    %38 = vector.load %arg1[%c696, %c0_25] : memref<1040x128xf32, #tpu.memory_space<vmem>>, vector<8x64xf32>
    %cst_26 = arith.constant dense<0.000000e+00> : vector<8x64xf32>
    %39 = tpu.matmul %30, %31, %cst_26 {dimension_numbers = #tpu.dot_dimension_numbers<[1], [0], [0], [1], [0, 0, 1, 1], [], []>} : vector<8x64xf32>, vector<64x64xf32>, vector<8x64xf32> -> vector<8x64xf32>
    %40 = arith.addf %39, %35 : vector<8x64xf32>
    %cst_27 = arith.constant dense<0.000000e+00> : vector<8x64xf32>
    %41 = tpu.matmul %30, %32, %cst_27 {dimension_numbers = #tpu.dot_dimension_numbers<[1], [0], [0], [1], [0, 0, 1, 1], [], []>} : vector<8x64xf32>, vector<64x64xf32>, vector<8x64xf32> -> vector<8x64xf32>
    %42 = arith.addf %41, %36 : vector<8x64xf32>
    %cst_28 = arith.constant dense<0.000000e+00> : vector<8x64xf32>
    %43 = tpu.matmul %30, %33, %cst_28 {dimension_numbers = #tpu.dot_dimension_numbers<[1], [0], [0], [1], [0, 0, 1, 1], [], []>} : vector<8x64xf32>, vector<64x64xf32>, vector<8x64xf32> -> vector<8x64xf32>
    %44 = arith.addf %43, %37 : vector<8x64xf32>
    %cst_29 = arith.constant dense<0.000000e+00> : vector<8x8xf32>
    %45 = tpu.matmul %40, %42, %cst_29 {dimension_numbers = #tpu.dot_dimension_numbers<[1], [1], [0], [0], [0, 0, 1, 0], [], []>} : vector<8x64xf32>, vector<8x64xf32>, vector<8x8xf32> -> vector<8x8xf32>
    %cst_30 = arith.constant dense<0xFF800000> : vector<8xf32>
    %46 = vector.multi_reduction <maximumf>, %45, %cst_30 [1] : vector<8x8xf32> to vector<8xf32>
    %47 = vector.shape_cast %46 : vector<8xf32> to vector<8x1xf32>
    %48 = vector.broadcast %47 : vector<8x1xf32> to vector<8x8xf32>
    %49 = arith.subf %45, %48 : vector<8x8xf32>
    %50 = math.exp %49 : vector<8x8xf32>
    %cst_31 = arith.constant dense<0.000000e+00> : vector<8xf32>
    %51 = vector.multi_reduction <add>, %50, %cst_31 [1] : vector<8x8xf32> to vector<8xf32>
    %52 = vector.shape_cast %51 : vector<8xf32> to vector<8x1xf32>
    %53 = vector.broadcast %52 : vector<8x1xf32> to vector<8x8xf32>
    %54 = arith.divf %50, %53 : vector<8x8xf32>
    %cst_32 = arith.constant dense<0.000000e+00> : vector<8x64xf32>
    %55 = tpu.matmul %54, %44, %cst_32 {dimension_numbers = #tpu.dot_dimension_numbers<[1], [0], [0], [1], [0, 0, 1, 1], [], []>} : vector<8x8xf32>, vector<8x64xf32>, vector<8x64xf32> -> vector<8x64xf32>
    %56 = tpu.concatenate %30, %55 in 1 : vector<8x64xf32>, vector<8x64xf32> -> vector<8x128xf32>
    %cst_33 = arith.constant dense<0.000000e+00> : vector<8x64xf32>
    %57 = tpu.matmul %56, %34, %cst_33 {dimension_numbers = #tpu.dot_dimension_numbers<[1], [0], [0], [1], [0, 0, 1, 1], [], []>} : vector<8x128xf32>, vector<128x64xf32>, vector<8x64xf32> -> vector<8x64xf32>
    %58 = arith.addf %57, %38 : vector<8x64xf32>
    %cst_34 = arith.constant 0.000000e+00 : f32
    %59 = vector.broadcast %cst_34 : f32 to vector<8x64xf32>
    %60 = arith.maximumf %58, %59 : vector<8x64xf32>
    %c704 = arith.constant 704 : index
    %c0_35 = arith.constant 0 : index
    %61 = vector.load %arg1[%c704, %c0_35] : memref<1040x128xf32, #tpu.memory_space<vmem>>, vector<64x128xf32>
    %cst_36 = arith.constant dense<0.000000e+00> : vector<8x128xf32>
    %62 = tpu.matmul %0, %61, %cst_36 {dimension_numbers = #tpu.dot_dimension_numbers<[1], [0], [0], [1], [0, 0, 1, 1], [], []>} : vector<8x64xf32>, vector<64x128xf32>, vector<8x128xf32> -> vector<8x128xf32>
    %c768 = arith.constant 768 : index
    %c0_37 = arith.constant 0 : index
    %63 = vector.load %arg1[%c768, %c0_37] : memref<1040x128xf32, #tpu.memory_space<vmem>>, vector<64x128xf32>
    %cst_38 = arith.constant dense<0.000000e+00> : vector<8x128xf32>
    %64 = tpu.matmul %30, %63, %cst_38 {dimension_numbers = #tpu.dot_dimension_numbers<[1], [0], [0], [1], [0, 0, 1, 1], [], []>} : vector<8x64xf32>, vector<64x128xf32>, vector<8x128xf32> -> vector<8x128xf32>
    %65 = arith.addf %62, %64 : vector<8x128xf32>
    %c832 = arith.constant 832 : index
    %c0_39 = arith.constant 0 : index
    %66 = vector.load %arg1[%c832, %c0_39] : memref<1040x128xf32, #tpu.memory_space<vmem>>, vector<64x128xf32>
    %cst_40 = arith.constant dense<0.000000e+00> : vector<8x128xf32>
    %67 = tpu.matmul %60, %66, %cst_40 {dimension_numbers = #tpu.dot_dimension_numbers<[1], [0], [0], [1], [0, 0, 1, 1], [], []>} : vector<8x64xf32>, vector<64x128xf32>, vector<8x128xf32> -> vector<8x128xf32>
    %68 = arith.addf %65, %67 : vector<8x128xf32>
    %c1024 = arith.constant 1024 : index
    %c0_41 = arith.constant 0 : index
    %69 = vector.load %arg1[%c1024, %c0_41] : memref<1040x128xf32, #tpu.memory_space<vmem>>, vector<8x128xf32>
    %70 = arith.addf %68, %69 : vector<8x128xf32>
    %cst_42 = arith.constant 0.000000e+00 : f32
    %71 = vector.broadcast %cst_42 : f32 to vector<8x128xf32>
    %72 = arith.maximumf %70, %71 : vector<8x128xf32>
    %c896 = arith.constant 896 : index
    %c0_43 = arith.constant 0 : index
    %73 = vector.load %arg1[%c896, %c0_43] : memref<1040x128xf32, #tpu.memory_space<vmem>>, vector<128x10xf32>
    %cst_44 = arith.constant dense<0.000000e+00> : vector<8x10xf32>
    %74 = tpu.matmul %72, %73, %cst_44 {dimension_numbers = #tpu.dot_dimension_numbers<[1], [0], [0], [1], [0, 0, 1, 1], [], []>} : vector<8x128xf32>, vector<128x10xf32>, vector<8x10xf32> -> vector<8x10xf32>
    %c1032 = arith.constant 1032 : index
    %c0_45 = arith.constant 0 : index
    %75 = vector.load %arg1[%c1032, %c0_45] : memref<1040x128xf32, #tpu.memory_space<vmem>>, vector<8x10xf32>
    %76 = arith.addf %74, %75 : vector<8x10xf32>
    %cst_46 = arith.constant dense<0xFF800000> : vector<8xf32>
    %77 = vector.multi_reduction <maximumf>, %76, %cst_46 [1] : vector<8x10xf32> to vector<8xf32>
    %78 = vector.shape_cast %77 : vector<8xf32> to vector<8x1xf32>
    %79 = vector.broadcast %78 : vector<8x1xf32> to vector<8x10xf32>
    %80 = arith.subf %76, %79 : vector<8x10xf32>
    %81 = math.exp %80 : vector<8x10xf32>
    %cst_47 = arith.constant dense<0.000000e+00> : vector<8xf32>
    %82 = vector.multi_reduction <add>, %81, %cst_47 [1] : vector<8x10xf32> to vector<8xf32>
    %83 = vector.shape_cast %82 : vector<8xf32> to vector<8x1xf32>
    %cst_48 = arith.constant 1.000000e-01 : f32
    %84 = vector.broadcast %cst_48 : f32 to vector<8x1xf32>
    %85 = arith.mulf %84, %83 : vector<8x1xf32>
    %86 = vector.broadcast %85 : vector<8x1xf32> to vector<8x10xf32>
    %87 = arith.cmpf oge, %81, %86 : vector<8x10xf32>
    %cst_49 = arith.constant 1.000000e+00 : f32
    %cst_50 = arith.constant 0.000000e+00 : f32
    %88 = vector.broadcast %cst_49 : f32 to vector<8x10xf32>
    %89 = vector.broadcast %cst_50 : f32 to vector<8x10xf32>
    %90 = arith.select %87, %88, %89 : vector<8x10xi1>, vector<8x10xf32>
    %c0_51 = arith.constant 0 : index
    %c0_52 = arith.constant 0 : index
    %91 = vector.load %arg2[%c0_51, %c0_52] : memref<8x10xf32, #tpu.memory_space<vmem>>, vector<8x10xf32>
    tpu.vector_store %arg2[%c0_51, %c0_52], %90 {strides = array<i32>} : memref<8x10xf32, #tpu.memory_space<vmem>>, vector<8x10xf32>,
    return
  }
}

</mosaic_0001>

<llo_original>
// kernel: adjacency_net.1
$region0: #{adjacency_net.1}
  #allocation0 [shape = 'u32[]', space=smem, size = 0x4, offset = 0x4, fixed_abs, tag = 'smem constant byte address 0x4 - core index']
  #allocation1 [shape = 'u32[144,128]{1,0:T(1,128)}', space=vmem, size = 0x12000, scoped, tag = 'internal scratch']
  %s0 = inlined_call_operand.hbm [shape: f32[8,64], index: 0, kind: input, shape index: {}]
  %s1 = inlined_call_operand.hbm [shape: f32[1040,128], index: 1, kind: input, shape index: {}]
  %s2 = inlined_call_operand.hbm [shape: f32[8,10], index: 2, kind: output, shape index: {}]
  %s3 = sld [smem:[#allocation0]]
  $region26: #{adjacency_net.1} parent=0
    _
  %s5 = ssub.s32 1, %s3
  %s6 = scalar_select 0, %s5, %s3
  $region1: #{adjacency_net.1} parent=0
    #allocation2 [shape = 'u8[4096]{0}', space=vmem, size = 0x1000, scoped, tag = 'input window, operand 0, single buffered']
    #allocation3 [shape = 's32[1]{0}', space=sflag, size = 0x4, scoped, tag = 'scoped memory for adjacency_net.1']
    #allocation4 [shape = 's32[1]{0}', space=sflag, size = 0x4, scoped, tag = 'scoped memory for adjacency_net.1']
    #allocation5 [shape = 'u8[532480]{0}', space=vmem, size = 0x82000, scoped, tag = 'input window, operand 1, single buffered']
    #allocation6 [shape = 's32[1]{0}', space=sflag, size = 0x4, scoped, tag = 'scoped memory for adjacency_net.1']
    #allocation7 [shape = 'u8[4096]{0}', space=vmem, size = 0x1000, scoped, tag = 'output window, operand 0, single buffered']
    %7 = vsyncpa [#allocation3], 0
    %8 = vsyncpa [#allocation6], 0
    %9 = vsyncpa [#allocation4], 0
    // Predicated region
    $region2: #{adjacency_net.1} parent=1 // pred_check
      _
    $region3: #{adjacency_net.1} parent=1 // pred_check_branch
      %11 = sbr.rel (0) target = $region5
    $region4: #{adjacency_net.1} parent=1 // pred_region
      %s13 = ssub.s32 128, 128
      %14 = vsyncadd [#allocation3], %s13
      %s16 = sshll.u32 [#allocation2], 4
      %s17 = int_to_ptr.vmem [resolvable:$true] %s16
      %19 = dma.hbm_to_vmem [thread:$0]  %s0, 128, %s17, [#allocation3]
    $region5: #{adjacency_net.1} parent=1 // pred_fallthru
      _
    // Predicated region
    $region6: #{adjacency_net.1} parent=1 // pred_check
      _
    $region7: #{adjacency_net.1} parent=1 // pred_check_branch
      %21 = sbr.rel (0) target = $region9
    $region8: #{adjacency_net.1} parent=1 // pred_region
      %s23 = ssub.s32 16640, 16640
      %24 = vsyncadd [#allocation6], %s23
      %s25 = sshll.u32 [#allocation5], 4
      %s26 = int_to_ptr.vmem [resolvable:$true] %s25
      %31 = dma.hbm_to_vmem [thread:$0]  %s1, 16640, %s26, [#allocation6], 128, 128, 8
    $region9: #{adjacency_net.1} parent=1 // pred_fallthru
      _
    // Predicated region
    $region10: #{adjacency_net.1} parent=1 // pred_check
      _
    $region11: #{adjacency_net.1} parent=1 // pred_check_branch
      %33 = sbr.rel (0) target = $region13
    $region12: #{adjacency_net.1} parent=1 // pred_region
      %34 = dma.done [#allocation3], 128
    $region13: #{adjacency_net.1} parent=1 // pred_fallthru
      _
    // Predicated region
    $region14: #{adjacency_net.1} parent=1 // pred_check
      _
    $region15: #{adjacency_net.1} parent=1 // pred_check_branch
      %36 = sbr.rel (0) target = $region17
    $region16: #{adjacency_net.1} parent=1 // pred_region
      %37 = dma.done [#allocation6], 16640
    $region17: #{adjacency_net.1} parent=1 // pred_fallthru
      _
    %v38 = vld [vmem:[#allocation2] sm:$0xff]
    %v39 = vld [vmem:[#allocation5] sm:$0xff]
    %v40 = vld [vmem:[#allocation5 + $0x8] sm:$0xff]
    %v41 = vld [vmem:[#allocation5 + $0x10] sm:$0xff]
    %v42 = vld [vmem:[#allocation5 + $0x18] sm:$0xff]
    %v43 = vld [vmem:[#allocation5 + $0x20] sm:$0xff]
    %v44 = vld [vmem:[#allocation5 + $0x28] sm:$0xff]
    %v45 = vld [vmem:[#allocation5 + $0x30] sm:$0xff]
    %v46 = vld [vmem:[#allocation5 + $0x38] sm:$0xff]
    %v47 = vld [vmem:[#allocation5 + $0x40] sm:$0xff]
    %v48 = vld [vmem:[#allocation5 + $0x48] sm:$0xff]
    %v49 = vld [vmem:[#allocation5 + $0x50] sm:$0xff]
    %v50 = vld [vmem:[#allocation5 + $0x58] sm:$0xff]
    %v51 = vld [vmem:[#allocation5 + $0x60] sm:$0xff]
    %v52 = vld [vmem:[#allocation5 + $0x68] sm:$0xff]
    %v53 = vld [vmem:[#allocation5 + $0x70] sm:$0xff]
    %v54 = vld [vmem:[#allocation5 + $0x78] sm:$0xff]
    %v55 = vld [vmem:[#allocation5 + $0x80] sm:$0xff]
    %v56 = vld [vmem:[#allocation5 + $0x88] sm:$0xff]
    %v57 = vld [vmem:[#allocation5 + $0x90] sm:$0xff]
    %v58 = vld [vmem:[#allocation5 + $0x98] sm:$0xff]
    %v59 = vld [vmem:[#allocation5 + $0xa0] sm:$0xff]
    %v60 = vld [vmem:[#allocation5 + $0xa8] sm:$0xff]
    %v61 = vld [vmem:[#allocation5 + $0xb0] sm:$0xff]
    %v62 = vld [vmem:[#allocation5 + $0xb8] sm:$0xff]
    %v63 = vld [vmem:[#allocation5 + $0xc0] sm:$0xff]
    %v64 = vld [vmem:[#allocation5 + $0xc8] sm:$0xff]
    %v65 = vld [vmem:[#allocation5 + $0xd0] sm:$0xff]
    %v66 = vld [vmem:[#allocation5 + $0xd8] sm:$0xff]
    %v67 = vld [vmem:[#allocation5 + $0xe0] sm:$0xff]
    %v68 = vld [vmem:[#allocation5 + $0xe8] sm:$0xff]
    %v69 = vld [vmem:[#allocation5 + $0xf0] sm:$0xff]
    %v70 = vld [vmem:[#allocation5 + $0xf8] sm:$0xff]
    %v71 = vld [vmem:[#allocation5 + $0x100] sm:$0xff]
    %v72 = vld [vmem:[#allocation5 + $0x108] sm:$0xff]
    %v73 = vld [vmem:[#allocation5 + $0x110] sm:$0xff]
    %v74 = vld [vmem:[#allocation5 + $0x118] sm:$0xff]
    %v75 = vld [vmem:[#allocation5 + $0x120] sm:$0xff]
    %v76 = vld [vmem:[#allocation5 + $0x128] sm:$0xff]
    %v77 = vld [vmem:[#allocation5 + $0x130] sm:$0xff]
    %v78 = vld [vmem:[#allocation5 + $0x138] sm:$0xff]
    %v79 = vld [vmem:[#allocation5 + $0x140] sm:$0xff]
    %v80 = vld [vmem:[#allocation5 + $0x148] sm:$0xff]
    %v81 = vld [vmem:[#allocation5 + $0x150] sm:$0xff]
    %v82 = vld [vmem:[#allocation5 + $0x158] sm:$0xff]
    %vm83 = vcmask 523264
    %v85 = vsel %vm83, %v38, 0
    %87 = vmatprep.subr.mxu0 0.0
    %88 = vmatpush1.msra.mxu0 %v39
    %89 = vmatprep.subr.mxu0 0.0
    %90 = vmatpush1.msra.mxu0 %v40
    %91 = vmatprep.subr.mxu0 0.0
    %92 = vmatpush1.msra.mxu0 %v41
    %93 = vmatprep.subr.mxu0 0.0
    %94 = vmatpush1.msra.mxu0 %v42
    %95 = vmatprep.subr.mxu0 0.0
    %96 = vmatpush1.msra.mxu0 %v43
    %97 = vmatprep.subr.mxu0 0.0
    %98 = vmatpush1.msra.mxu0 %v44
    %99 = vmatprep.subr.mxu0 0.0
    %100 = vmatpush1.msra.mxu0 %v45
    %101 = vmatprep.subr.mxu0 0.0
    %102 = vmatpush1.msra.mxu0 %v46
    %103 = vmatprep.subr.mxu0 0.0
    %104 = vmatpush1.msra.mxu0 0.0
    %105 = vmatprep.subr.mxu0 0.0
    %106 = vmatpush1.msra.mxu0 0.0
    %107 = vmatprep.subr.mxu0 0.0
    %108 = vmatpush1.msra.mxu0 0.0
    %109 = vmatprep.subr.mxu0 0.0
    %110 = vmatpush1.msra.mxu0 0.0
    %111 = vmatprep.subr.mxu0 0.0
    %112 = vmatpush1.msra.mxu0 0.0
    %113 = vmatprep.subr.mxu0 0.0
    %114 = vmatpush1.msra.mxu0 0.0
    %115 = vmatprep.subr.mxu0 0.0
    %116 = vmatpush1.msra.mxu0 0.0
    %117 = vmatprep.subr.mxu0 0.0
    %118 = vmatpush1.msra.mxu0 0.0
    %119 = vmatprep.subr.mxu0 0.0
    %120 = vmatpush1.msra.mxu0 0.0
    %121 = vmatprep.subr.mxu0 0.0
    %122 = vmatpush1.msra.mxu0 0.0
    %123 = vmatprep.subr.mxu0 0.0
    %124 = vmatpush1.msra.mxu0 0.0
    %125 = vmatprep.subr.mxu0 0.0
    %126 = vmatpush1.msra.mxu0 0.0
    %127 = vmatprep.subr.mxu0 0.0
    %128 = vmatpush1.msra.mxu0 0.0
    %129 = vmatprep.subr.mxu0 0.0
    %130 = vmatpush1.msra.mxu0 0.0
    %131 = vmatprep.subr.mxu0 0.0
    %132 = vmatpush1.msra.mxu0 0.0
    %133 = vmatprep.subr.mxu0 0.0
    %134 = vmatpush1.msra.mxu0 0.0
    %135 = vmatprep.subr.mxu0 0.0
    %136 = vmatpush1.msra.mxu0 0.0
    %137 = vmatprep.subr.mxu0 0.0
    %138 = vmatpush1.msra.mxu0 0.0
    %139 = vmatprep.subr.mxu0 0.0
    %140 = vmatpush1.msra.mxu0 0.0
    %141 = vmatprep.subr.mxu0 0.0
    %142 = vmatpush1.msra.mxu0 0.0
    %143 = vmatprep.subr.mxu0 0.0
    %144 = vmatpush1.msra.mxu0 0.0
    %145 = vmatprep.subr.mxu0 0.0
    %146 = vmatpush1.msra.mxu0 0.0
    %147 = vmatprep.subr.mxu0 0.0
    %148 = vmatpush1.msra.mxu0 0.0
    %149 = vmatprep.subr.mxu0 0.0
    %150 = vmatpush1.msra.mxu0 0.0
    %151 = vmatprep.mubr.f32.mxu0 0.0
    %152 = vmatmul.mubr.f32.gmra.mrb[0].mxu0 %v85
    %v153 = vpop.f32.mrb[0].mxu0
    %v154 = vadd.f32 %v79, %v153
    %v155 = vpop.f32.mrb[0].mxu0
    %156 = vdwg.mxu0
    %157 = vmatprep.subr.mxu0 0.0
    %158 = vmatpush1.msra.mxu0 %v47
    %159 = vmatprep.subr.mxu0 0.0
    %160 = vmatpush1.msra.mxu0 %v48
    %161 = vmatprep.subr.mxu0 0.0
    %162 = vmatpush1.msra.mxu0 %v49
    %163 = vmatprep.subr.mxu0 0.0
    %164 = vmatpush1.msra.mxu0 %v50
    %165 = vmatprep.subr.mxu0 0.0
    %166 = vmatpush1.msra.mxu0 %v51
    %167 = vmatprep.subr.mxu0 0.0
    %168 = vmatpush1.msra.mxu0 %v52
    %169 = vmatprep.subr.mxu0 0.0
    %170 = vmatpush1.msra.mxu0 %v53
    %171 = vmatprep.subr.mxu0 0.0
    %172 = vmatpush1.msra.mxu0 %v54
    %173 = vmatprep.subr.mxu0 0.0
    %174 = vmatpush1.msra.mxu0 0.0
    %175 = vmatprep.subr.mxu0 0.0
    %176 = vmatpush1.msra.mxu0 0.0
    %177 = vmatprep.subr.mxu0 0.0
    %178 = vmatpush1.msra.mxu0 0.0
    %179 = vmatprep.subr.mxu0 0.0
    %180 = vmatpush1.msra.mxu0 0.0
    %181 = vmatprep.subr.mxu0 0.0
    %182 = vmatpush1.msra.mxu0 0.0
    %183 = vmatprep.subr.mxu0 0.0
    %184 = vmatpush1.msra.mxu0 0.0
    %185 = vmatprep.subr.mxu0 0.0
    %186 = vmatpush1.msra.mxu0 0.0
    %187 = vmatprep.subr.mxu0 0.0
    %188 = vmatpush1.msra.mxu0 0.0
    %189 = vmatprep.subr.mxu0 0.0
    %190 = vmatpush1.msra.mxu0 0.0
    %191 = vmatprep.subr.mxu0 0.0
    %192 = vmatpush1.msra.mxu0 0.0
    %193 = vmatprep.subr.mxu0 0.0
    %194 = vmatpush1.msra.mxu0 0.0
    %195 = vmatprep.subr.mxu0 0.0
    %196 = vmatpush1.msra.mxu0 0.0
    %197 = vmatprep.subr.mxu0 0.0
    %198 = vmatpush1.msra.mxu0 0.0
    %199 = vmatprep.subr.mxu0 0.0
    %200 = vmatpush1.msra.mxu0 0.0
    %201 = vmatprep.subr.mxu0 0.0
    %202 = vmatpush1.msra.mxu0 0.0
    %203 = vmatprep.subr.mxu0 0.0
    %204 = vmatpush1.msra.mxu0 0.0
    %205 = vmatprep.subr.mxu0 0.0
    %206 = vmatpush1.msra.mxu0 0.0
    %207 = vmatprep.subr.mxu0 0.0
    %208 = vmatpush1.msra.mxu0 0.0
    %209 = vmatprep.subr.mxu0 0.0
    %210 = vmatpush1.msra.mxu0 0.0
    %211 = vmatprep.subr.mxu0 0.0
    %212 = vmatpush1.msra.mxu0 0.0
    %213 = vmatprep.subr.mxu0 0.0
    %214 = vmatpush1.msra.mxu0 0.0
    %215 = vmatprep.subr.mxu0 0.0
    %216 = vmatpush1.msra.mxu0 0.0
    %217 = vmatprep.subr.mxu0 0.0
    %218 = vmatpush1.msra.mxu0 0.0
    %219 = vmatprep.subr.mxu0 0.0
    %220 = vmatpush1.msra.mxu0 0.0
    %221 = vmatprep.mubr.f32.mxu0 0.0
    %222 = vmatmul.mubr.f32.gmra.mrb[0].mxu0 %v85
    %v223 = vpop.f32.mrb[0].mxu0
    %v224 = vadd.f32 %v80, %v223
    %v225 = vpop.f32.mrb[0].mxu0
    %226 = vdwg.mxu0
    %227 = vmatprep.subr.mxu0 0.0
    %228 = vmatpush1.msra.mxu0 %v55
    %229 = vmatprep.subr.mxu0 0.0
    %230 = vmatpush1.msra.mxu0 %v56
    %231 = vmatprep.subr.mxu0 0.0
    %232 = vmatpush1.msra.mxu0 %v57
    %233 = vmatprep.subr.mxu0 0.0
    %234 = vmatpush1.msra.mxu0 %v58
    %235 = vmatprep.subr.mxu0 0.0
    %236 = vmatpush1.msra.mxu0 %v59
    %237 = vmatprep.subr.mxu0 0.0
    %238 = vmatpush1.msra.mxu0 %v60
    %239 = vmatprep.subr.mxu0 0.0
    %240 = vmatpush1.msra.mxu0 %v61
    %241 = vmatprep.subr.mxu0 0.0
    %242 = vmatpush1.msra.mxu0 %v62
    %243 = vmatprep.subr.mxu0 0.0
    %244 = vmatpush1.msra.mxu0 0.0
    %245 = vmatprep.subr.mxu0 0.0
    %246 = vmatpush1.msra.mxu0 0.0
    %247 = vmatprep.subr.mxu0 0.0
    %248 = vmatpush1.msra.mxu0 0.0
    %249 = vmatprep.subr.mxu0 0.0
    %250 = vmatpush1.msra.mxu0 0.0
    %251 = vmatprep.subr.mxu0 0.0
    %252 = vmatpush1.msra.mxu0 0.0
    %253 = vmatprep.subr.mxu0 0.0
    %254 = vmatpush1.msra.mxu0 0.0
    %255 = vmatprep.subr.mxu0 0.0
    %256 = vmatpush1.msra.mxu0 0.0
    %257 = vmatprep.subr.mxu0 0.0
    %258 = vmatpush1.msra.mxu0 0.0
    %259 = vmatprep.subr.mxu0 0.0
    %260 = vmatpush1.msra.mxu0 0.0
    %261 = vmatprep.subr.mxu0 0.0
    %262 = vmatpush1.msra.mxu0 0.0
    %263 = vmatprep.subr.mxu0 0.0
    %264 = vmatpush1.msra.mxu0 0.0
    %265 = vmatprep.subr.mxu0 0.0
    %266 = vmatpush1.msra.mxu0 0.0
    %267 = vmatprep.subr.mxu0 0.0
    %268 = vmatpush1.msra.mxu0 0.0
    %269 = vmatprep.subr.mxu0 0.0
    %270 = vmatpush1.msra.mxu0 0.0
    %271 = vmatprep.subr.mxu0 0.0
    %272 = vmatpush1.msra.mxu0 0.0
    %273 = vmatprep.subr.mxu0 0.0
    %274 = vmatpush1.msra.mxu0 0.0
    %275 = vmatprep.subr.mxu0 0.0
    %276 = vmatpush1.msra.mxu0 0.0
    %277 = vmatprep.subr.mxu0 0.0
    %278 = vmatpush1.msra.mxu0 0.0
    %279 = vmatprep.subr.mxu0 0.0
    %280 = vmatpush1.msra.mxu0 0.0
    %281 = vmatprep.subr.mxu0 0.0
    %282 = vmatpush1.msra.mxu0 0.0
    %283 = vmatprep.subr.mxu0 0.0
    %284 = vmatpush1.msra.mxu0 0.0
    %285 = vmatprep.subr.mxu0 0.0
    %286 = vmatpush1.msra.mxu0 0.0
    %287 = vmatprep.subr.mxu0 0.0
    %288 = vmatpush1.msra.mxu0 0.0
    %289 = vmatprep.subr.mxu0 0.0
    %290 = vmatpush1.msra.mxu0 0.0
    %291 = vmatprep.mubr.f32.mxu0 0.0
    %292 = vmatmul.mubr.f32.gmra.mrb[0].mxu0 %v85
    %v293 = vpop.f32.mrb[0].mxu0
    %v294 = vadd.f32 %v81, %v293
    %v295 = vpop.f32.mrb[0].mxu0
    %296 = vdwg.mxu0
    %v298 = vsel %vm83, %v154, 0
    %v301 = vsel %vm83, %v224, 0
    %303 = vmatprep.subr.mxu0 0.0
    %304 = vmatpush1.xpose.msra.mxu0 %v301
    %305 = vmatprep.subr.mxu0 0.0
    %306 = vmatpush1.xpose.msra.mxu0 0.0
    %307 = vmatprep.subr.mxu0 0.0
    %308 = vmatpush1.xpose.msra.mxu0 0.0
    %309 = vmatprep.subr.mxu0 0.0
    %310 = vmatpush1.xpose.msra.mxu0 0.0
    %311 = vmatprep.subr.mxu0 0.0
    %312 = vmatpush1.xpose.msra.mxu0 0.0
    %313 = vmatprep.subr.mxu0 0.0
    %314 = vmatpush1.xpose.msra.mxu0 0.0
    %315 = vmatprep.subr.mxu0 0.0
    %316 = vmatpush1.xpose.msra.mxu0 0.0
    %317 = vmatprep.subr.mxu0 0.0
    %318 = vmatpush1.xpose.msra.mxu0 0.0
    %319 = vmatprep.subr.mxu0 0.0
    %320 = vmatpush1.xpose.msra.mxu0 0.0
    %321 = vmatprep.subr.mxu0 0.0
    %322 = vmatpush1.xpose.msra.mxu0 0.0
    %323 = vmatprep.subr.mxu0 0.0
    %324 = vmatpush1.xpose.msra.mxu0 0.0
    %325 = vmatprep.subr.mxu0 0.0
    %326 = vmatpush1.xpose.msra.mxu0 0.0
    %327 = vmatprep.subr.mxu0 0.0
    %328 = vmatpush1.xpose.msra.mxu0 0.0
    %329 = vmatprep.subr.mxu0 0.0
    %330 = vmatpush1.xpose.msra.mxu0 0.0
    %331 = vmatprep.subr.mxu0 0.0
    %332 = vmatpush1.xpose.msra.mxu0 0.0
    %333 = vmatprep.subr.mxu0 0.0
    %334 = vmatpush1.xpose.msra.mxu0 0.0
    %335 = vmatprep.subr.mxu0 0.0
    %336 = vmatpush1.xpose.msra.mxu0 0.0
    %337 = vmatprep.subr.mxu0 0.0
    %338 = vmatpush1.xpose.msra.mxu0 0.0
    %339 = vmatprep.subr.mxu0 0.0
    %340 = vmatpush1.xpose.msra.mxu0 0.0
    %341 = vmatprep.subr.mxu0 0.0
    %342 = vmatpush1.xpose.msra.mxu0 0.0
    %343 = vmatprep.subr.mxu0 0.0
    %344 = vmatpush1.xpose.msra.mxu0 0.0
    %345 = vmatprep.subr.mxu0 0.0
    %346 = vmatpush1.xpose.msra.mxu0 0.0
    %347 = vmatprep.subr.mxu0 0.0
    %348 = vmatpush1.xpose.msra.mxu0 0.0
    %349 = vmatprep.subr.mxu0 0.0
    %350 = vmatpush1.xpose.msra.mxu0 0.0
    %351 = vmatprep.subr.mxu0 0.0
    %352 = vmatpush1.xpose.msra.mxu0 0.0
    %353 = vmatprep.subr.mxu0 0.0
    %354 = vmatpush1.xpose.msra.mxu0 0.0
    %355 = vmatprep.subr.mxu0 0.0
    %356 = vmatpush1.xpose.msra.mxu0 0.0
    %357 = vmatprep.subr.mxu0 0.0
    %358 = vmatpush1.xpose.msra.mxu0 0.0
    %359 = vmatprep.subr.mxu0 0.0
    %360 = vmatpush1.xpose.msra.mxu0 0.0
    %361 = vmatprep.subr.mxu0 0.0
    %362 = vmatpush1.xpose.msra.mxu0 0.0
    %363 = vmatprep.subr.mxu0 0.0
    %364 = vmatpush1.xpose.msra.mxu0 0.0
    %365 = vmatprep.subr.mxu0 0.0
    %366 = vmatpush1.xpose.msra.mxu0 0.0
    %367 = vmatprep.mubr.f32.mxu0 0.0
    %368 = vmatmul.mubr.f32.gmra.mrb[0].mxu0 %v298
    %v369 = vpop.f32.mrb[0].mxu0
    %v370 = vadd.f32 0.0, %v369
    %v371 = vpop.f32.mrb[0].mxu0
    %372 = vdwg.mxu0
    %vm373 = vcmask 64512
    %v374 = vsel %vm373, %v370, -inf
    %375 = vmax.xlane.f32.xlu0 %v374
    %v376 = vpop.xlane.xlu0 %375
    %v377 = vsub.f32 %v370, %v376
    %v378 = vmul.f32 %v377, 1.442695
    %v379 = vpow.pop %v378
    %v380 = vsel %vm373, %v379, 0.0
    %381 = vadd.xlane.f32.xlu0 %v380
    %v382 = vpop.xlane.xlu0 %381
    %v383 = vrcp.pop %v382
    %v384 = vmul.f32 %v379, %v383
    %v386 = vsel %vm373, %v384, 0
    %388 = vmatprep.subr.mxu0 0.0
    %389 = vmatpush1.msra.mxu0 %v294
    %390 = vmatprep.subr.mxu0 0.0
    %391 = vmatpush1.msra.mxu0 0.0
    %392 = vmatprep.subr.mxu0 0.0
    %393 = vmatpush1.msra.mxu0 0.0
    %394 = vmatprep.subr.mxu0 0.0
    %395 = vmatpush1.msra.mxu0 0.0
    %396 = vmatprep.subr.mxu0 0.0
    %397 = vmatpush1.msra.mxu0 0.0
    %398 = vmatprep.subr.mxu0 0.0
    %399 = vmatpush1.msra.mxu0 0.0
    %400 = vmatprep.subr.mxu0 0.0
    %401 = vmatpush1.msra.mxu0 0.0
    %402 = vmatprep.subr.mxu0 0.0
    %403 = vmatpush1.msra.mxu0 0.0
    %404 = vmatprep.subr.mxu0 0.0
    %405 = vmatpush1.msra.mxu0 0.0
    %406 = vmatprep.subr.mxu0 0.0
    %407 = vmatpush1.msra.mxu0 0.0
    %408 = vmatprep.subr.mxu0 0.0
    %409 = vmatpush1.msra.mxu0 0.0
    %410 = vmatprep.subr.mxu0 0.0
    %411 = vmatpush1.msra.mxu0 0.0
    %412 = vmatprep.subr.mxu0 0.0
    %413 = vmatpush1.msra.mxu0 0.0
    %414 = vmatprep.subr.mxu0 0.0
    %415 = vmatpush1.msra.mxu0 0.0
    %416 = vmatprep.subr.mxu0 0.0
    %417 = vmatpush1.msra.mxu0 0.0
    %418 = vmatprep.subr.mxu0 0.0
    %419 = vmatpush1.msra.mxu0 0.0
    %420 = vmatprep.subr.mxu0 0.0
    %421 = vmatpush1.msra.mxu0 0.0
    %422 = vmatprep.subr.mxu0 0.0
    %423 = vmatpush1.msra.mxu0 0.0
    %424 = vmatprep.subr.mxu0 0.0
    %425 = vmatpush1.msra.mxu0 0.0
    %426 = vmatprep.subr.mxu0 0.0
    %427 = vmatpush1.msra.mxu0 0.0
    %428 = vmatprep.subr.mxu0 0.0
    %429 = vmatpush1.msra.mxu0 0.0
    %430 = vmatprep.subr.mxu0 0.0
    %431 = vmatpush1.msra.mxu0 0.0
    %432 = vmatprep.subr.mxu0 0.0
    %433 = vmatpush1.msra.mxu0 0.0
    %434 = vmatprep.subr.mxu0 0.0
    %435 = vmatpush1.msra.mxu0 0.0
    %436 = vmatprep.subr.mxu0 0.0
    %437 = vmatpush1.msra.mxu0 0.0
    %438 = vmatprep.subr.mxu0 0.0
    %439 = vmatpush1.msra.mxu0 0.0
    %440 = vmatprep.subr.mxu0 0.0
    %441 = vmatpush1.msra.mxu0 0.0
    %442 = vmatprep.subr.mxu0 0.0
    %443 = vmatpush1.msra.mxu0 0.0
    %444 = vmatprep.subr.mxu0 0.0
    %445 = vmatpush1.msra.mxu0 0.0
    %446 = vmatprep.subr.mxu0 0.0
    %447 = vmatpush1.msra.mxu0 0.0
    %448 = vmatprep.subr.mxu0 0.0
    %449 = vmatpush1.msra.mxu0 0.0
    %450 = vmatprep.subr.mxu0 0.0
    %451 = vmatpush1.msra.mxu0 0.0
    %452 = vmatprep.mubr.f32.mxu0 0.0
    %453 = vmatmul.mubr.f32.gmra.mrb[0].mxu0 %v386
    %v454 = vpop.f32.mrb[0].mxu0
    %v455 = vadd.f32 0.0, %v454
    %v456 = vpop.f32.mrb[0].mxu0
    %457 = vdwg.mxu0
    %459 = vrot.lane.b32.xlu0 %v455, 64
    %v460 = vpop.permute.xlu0 %459
    %v462 = vsel %vm83, %v38, %v460
    %463 = vmatprep.subr.mxu0 0.0
    %464 = vmatpush1.msra.mxu0 %v63
    %465 = vmatprep.subr.mxu0 0.0
    %466 = vmatpush1.msra.mxu0 %v64
    %467 = vmatprep.subr.mxu0 0.0
    %468 = vmatpush1.msra.mxu0 %v65
    %469 = vmatprep.subr.mxu0 0.0
    %470 = vmatpush1.msra.mxu0 %v66
    %471 = vmatprep.subr.mxu0 0.0
    %472 = vmatpush1.msra.mxu0 %v67
    %473 = vmatprep.subr.mxu0 0.0
    %474 = vmatpush1.msra.mxu0 %v68
    %475 = vmatprep.subr.mxu0 0.0
    %476 = vmatpush1.msra.mxu0 %v69
    %477 = vmatprep.subr.mxu0 0.0
    %478 = vmatpush1.msra.mxu0 %v70
    %479 = vmatprep.subr.mxu0 0.0
    %480 = vmatpush1.msra.mxu0 %v71
    %481 = vmatprep.subr.mxu0 0.0
    %482 = vmatpush1.msra.mxu0 %v72
    %483 = vmatprep.subr.mxu0 0.0
    %484 = vmatpush1.msra.mxu0 %v73
    %485 = vmatprep.subr.mxu0 0.0
    %486 = vmatpush1.msra.mxu0 %v74
    %487 = vmatprep.subr.mxu0 0.0
    %488 = vmatpush1.msra.mxu0 %v75
    %489 = vmatprep.subr.mxu0 0.0
    %490 = vmatpush1.msra.mxu0 %v76
    %491 = vmatprep.subr.mxu0 0.0
    %492 = vmatpush1.msra.mxu0 %v77
    %493 = vmatprep.subr.mxu0 0.0
    %494 = vmatpush1.msra.mxu0 %v78
    %495 = vmatprep.subr.mxu0 0.0
    %496 = vmatpush1.msra.mxu0 0.0
    %497 = vmatprep.subr.mxu0 0.0
    %498 = vmatpush1.msra.mxu0 0.0
    %499 = vmatprep.subr.mxu0 0.0
    %500 = vmatpush1.msra.mxu0 0.0
    %501 = vmatprep.subr.mxu0 0.0
    %502 = vmatpush1.msra.mxu0 0.0
    %503 = vmatprep.subr.mxu0 0.0
    %504 = vmatpush1.msra.mxu0 0.0
    %505 = vmatprep.subr.mxu0 0.0
    %506 = vmatpush1.msra.mxu0 0.0
    %507 = vmatprep.subr.mxu0 0.0
    %508 = vmatpush1.msra.mxu0 0.0
    %509 = vmatprep.subr.mxu0 0.0
    %510 = vmatpush1.msra.mxu0 0.0
    %511 = vmatprep.subr.mxu0 0.0
    %512 = vmatpush1.msra.mxu0 0.0
    %513 = vmatprep.subr.mxu0 0.0
    %514 = vmatpush1.msra.mxu0 0.0
    %515 = vmatprep.subr.mxu0 0.0
    %516 = vmatpush1.msra.mxu0 0.0
    %517 = vmatprep.subr.mxu0 0.0
    %518 = vmatpush1.msra.mxu0 0.0
    %519 = vmatprep.subr.mxu0 0.0
    %520 = vmatpush1.msra.mxu0 0.0
    %521 = vmatprep.subr.mxu0 0.0
    %522 = vmatpush1.msra.mxu0 0.0
    %523 = vmatprep.subr.mxu0 0.0
    %524 = vmatpush1.msra.mxu0 0.0
    %525 = vmatprep.subr.mxu0 0.0
    %526 = vmatpush1.msra.mxu0 0.0
    %527 = vmatprep.mubr.f32.mxu0 0.0
    %528 = vmatmul.mubr.f32.gmra.mrb[0].mxu0 %v462
    %v529 = vpop.f32.mrb[0].mxu0
    %v530 = vadd.f32 %v82, %v529
    %v531 = vpop.f32.mrb[0].mxu0
    %532 = vdwg.mxu0
    %v533 = vmax.f32 %v530, 0.0
    %v534 = vld [vmem:[#allocation5 + $0x160] sm:$0xff]
    %v535 = vld [vmem:[#allocation5 + $0x168] sm:$0xff]
    %v536 = vld [vmem:[#allocation5 + $0x170] sm:$0xff]
    %v537 = vld [vmem:[#allocation5 + $0x178] sm:$0xff]
    %v538 = vld [vmem:[#allocation5 + $0x180] sm:$0xff]
    %v539 = vld [vmem:[#allocation5 + $0x188] sm:$0xff]
    %v540 = vld [vmem:[#allocation5 + $0x190] sm:$0xff]
    %v541 = vld [vmem:[#allocation5 + $0x198] sm:$0xff]
    %v542 = vld [vmem:[#allocation5 + $0x1a0] sm:$0xff]
    %v543 = vld [vmem:[#allocation5 + $0x1a8] sm:$0xff]
    %v544 = vld [vmem:[#allocation5 + $0x1b0] sm:$0xff]
    %v545 = vld [vmem:[#allocation5 + $0x1b8] sm:$0xff]
    %v546 = vld [vmem:[#allocation5 + $0x1c0] sm:$0xff]
    %v547 = vld [vmem:[#allocation5 + $0x1c8] sm:$0xff]
    %v548 = vld [vmem:[#allocation5 + $0x1d0] sm:$0xff]
    %v549 = vld [vmem:[#allocation5 + $0x1d8] sm:$0xff]
    %v550 = vld [vmem:[#allocation5 + $0x1e0] sm:$0xff]
    %v551 = vld [vmem:[#allocation5 + $0x1e8] sm:$0xff]
    %v552 = vld [vmem:[#allocation5 + $0x1f0] sm:$0xff]
    %v553 = vld [vmem:[#allocation5 + $0x1f8] sm:$0xff]
    %v554 = vld [vmem:[#allocation5 + $0x200] sm:$0xff]
    %v555 = vld [vmem:[#allocation5 + $0x208] sm:$0xff]
    %v556 = vld [vmem:[#allocation5 + $0x210] sm:$0xff]
    %v557 = vld [vmem:[#allocation5 + $0x218] sm:$0xff]
    %v558 = vld [vmem:[#allocation5 + $0x220] sm:$0xff]
    %v559 = vld [vmem:[#allocation5 + $0x228] sm:$0xff]
    %v560 = vld [vmem:[#allocation5 + $0x230] sm:$0xff]
    %v561 = vld [vmem:[#allocation5 + $0x238] sm:$0xff]
    %v562 = vld [vmem:[#allocation5 + $0x240] sm:$0xff]
    %v563 = vld [vmem:[#allocation5 + $0x248] sm:$0xff]
    %v564 = vld [vmem:[#allocation5 + $0x250] sm:$0xff]
    %v565 = vld [vmem:[#allocation5 + $0x258] sm:$0xff]
    %v566 = vld [vmem:[#allocation5 + $0x260] sm:$0xff]
    %v567 = vld [vmem:[#allocation5 + $0x268] sm:$0xff]
    %v568 = vld [vmem:[#allocation5 + $0x270] sm:$0xff]
    %v569 = vld [vmem:[#allocation5 + $0x278] sm:$0xff]
    %v570 = vld [vmem:[#allocation5 + $0x280] sm:$0xff]
    %v571 = vld [vmem:[#allocation5 + $0x288] sm:$0xff]
    %v572 = vld [vmem:[#allocation5 + $0x290] sm:$0xff]
    %v573 = vld [vmem:[#allocation5 + $0x298] sm:$0xff]
    %v574 = vld [vmem:[#allocation5 + $0x2a0] sm:$0xff]
    %v575 = vld [vmem:[#allocation5 + $0x2a8] sm:$0xff]
    %v576 = vld [vmem:[#allocation5 + $0x2b0] sm:$0xff]
    %v577 = vld [vmem:[#allocation5 + $0x2b8] sm:$0xff]
    %v579 = vsel %vm83, %v533, 0
    %581 = vmatprep.subr.mxu0 0.0
    %582 = vmatpush1.msra.mxu0 %v534
    %583 = vmatprep.subr.mxu0 0.0
    %584 = vmatpush1.msra.mxu0 %v535
    %585 = vmatprep.subr.mxu0 0.0
    %586 = vmatpush1.msra.mxu0 %v536
    %587 = vmatprep.subr.mxu0 0.0
    %588 = vmatpush1.msra.mxu0 %v537
    %589 = vmatprep.subr.mxu0 0.0
    %590 = vmatpush1.msra.mxu0 %v538
    %591 = vmatprep.subr.mxu0 0.0
    %592 = vmatpush1.msra.mxu0 %v539
    %593 = vmatprep.subr.mxu0 0.0
    %594 = vmatpush1.msra.mxu0 %v540
    %595 = vmatprep.subr.mxu0 0.0
    %596 = vmatpush1.msra.mxu0 %v541
    %597 = vmatprep.subr.mxu0 0.0
    %598 = vmatpush1.msra.mxu0 0.0
    %599 = vmatprep.subr.mxu0 0.0
    %600 = vmatpush1.msra.mxu0 0.0
    %601 = vmatprep.subr.mxu0 0.0
    %602 = vmatpush1.msra.mxu0 0.0
    %603 = vmatprep.subr.mxu0 0.0
    %604 = vmatpush1.msra.mxu0 0.0
    %605 = vmatprep.subr.mxu0 0.0
    %606 = vmatpush1.msra.mxu0 0.0
    %607 = vmatprep.subr.mxu0 0.0
    %608 = vmatpush1.msra.mxu0 0.0
    %609 = vmatprep.subr.mxu0 0.0
    %610 = vmatpush1.msra.mxu0 0.0
    %611 = vmatprep.subr.mxu0 0.0
    %612 = vmatpush1.msra.mxu0 0.0
    %613 = vmatprep.subr.mxu0 0.0
    %614 = vmatpush1.msra.mxu0 0.0
    %615 = vmatprep.subr.mxu0 0.0
    %616 = vmatpush1.msra.mxu0 0.0
    %617 = vmatprep.subr.mxu0 0.0
    %618 = vmatpush1.msra.mxu0 0.0
    %619 = vmatprep.subr.mxu0 0.0
    %620 = vmatpush1.msra.mxu0 0.0
    %621 = vmatprep.subr.mxu0 0.0
    %622 = vmatpush1.msra.mxu0 0.0
    %623 = vmatprep.subr.mxu0 0.0
    %624 = vmatpush1.msra.mxu0 0.0
    %625 = vmatprep.subr.mxu0 0.0
    %626 = vmatpush1.msra.mxu0 0.0
    %627 = vmatprep.subr.mxu0 0.0
    %628 = vmatpush1.msra.mxu0 0.0
    %629 = vmatprep.subr.mxu0 0.0
    %630 = vmatpush1.msra.mxu0 0.0
    %631 = vmatprep.subr.mxu0 0.0
    %632 = vmatpush1.msra.mxu0 0.0
    %633 = vmatprep.subr.mxu0 0.0
    %634 = vmatpush1.msra.mxu0 0.0
    %635 = vmatprep.subr.mxu0 0.0
    %636 = vmatpush1.msra.mxu0 0.0
    %637 = vmatprep.subr.mxu0 0.0
    %638 = vmatpush1.msra.mxu0 0.0
    %639 = vmatprep.subr.mxu0 0.0
    %640 = vmatpush1.msra.mxu0 0.0
    %641 = vmatprep.subr.mxu0 0.0
    %642 = vmatpush1.msra.mxu0 0.0
    %643 = vmatprep.subr.mxu0 0.0
    %644 = vmatpush1.msra.mxu0 0.0
    %645 = vmatprep.mubr.f32.mxu0 0.0
    %646 = vmatmul.mubr.f32.gmra.mrb[0].mxu0 %v579
    %v647 = vpop.f32.mrb[0].mxu0
    %v648 = vadd.f32 %v574, %v647
    %v649 = vpop.f32.mrb[0].mxu0
    %650 = vdwg.mxu0
    %651 = vmatprep.subr.mxu0 0.0
    %652 = vmatpush1.msra.mxu0 %v542
    %653 = vmatprep.subr.mxu0 0.0
    %654 = vmatpush1.msra.mxu0 %v543
    %655 = vmatprep.subr.mxu0 0.0
    %656 = vmatpush1.msra.mxu0 %v544
    %657 = vmatprep.subr.mxu0 0.0
    %658 = vmatpush1.msra.mxu0 %v545
    %659 = vmatprep.subr.mxu0 0.0
    %660 = vmatpush1.msra.mxu0 %v546
    %661 = vmatprep.subr.mxu0 0.0
    %662 = vmatpush1.msra.mxu0 %v547
    %663 = vmatprep.subr.mxu0 0.0
    %664 = vmatpush1.msra.mxu0 %v548
    %665 = vmatprep.subr.mxu0 0.0
    %666 = vmatpush1.msra.mxu0 %v549
    %667 = vmatprep.subr.mxu0 0.0
    %668 = vmatpush1.msra.mxu0 0.0
    %669 = vmatprep.subr.mxu0 0.0
    %670 = vmatpush1.msra.mxu0 0.0
    %671 = vmatprep.subr.mxu0 0.0
    %672 = vmatpush1.msra.mxu0 0.0
    %673 = vmatprep.subr.mxu0 0.0
    %674 = vmatpush1.msra.mxu0 0.0
    %675 = vmatprep.subr.mxu0 0.0
    %676 = vmatpush1.msra.mxu0 0.0
    %677 = vmatprep.subr.mxu0 0.0
    %678 = vmatpush1.msra.mxu0 0.0
    %679 = vmatprep.subr.mxu0 0.0
    %680 = vmatpush1.msra.mxu0 0.0
    %681 = vmatprep.subr.mxu0 0.0
    %682 = vmatpush1.msra.mxu0 0.0
    %683 = vmatprep.subr.mxu0 0.0
    %684 = vmatpush1.msra.mxu0 0.0
    %685 = vmatprep.subr.mxu0 0.0
    %686 = vmatpush1.msra.mxu0 0.0
    %687 = vmatprep.subr.mxu0 0.0
    %688 = vmatpush1.msra.mxu0 0.0
    %689 = vmatprep.subr.mxu0 0.0
    %690 = vmatpush1.msra.mxu0 0.0
    %691 = vmatprep.subr.mxu0 0.0
    %692 = vmatpush1.msra.mxu0 0.0
    %693 = vmatprep.subr.mxu0 0.0
    %694 = vmatpush1.msra.mxu0 0.0
    %695 = vmatprep.subr.mxu0 0.0
    %696 = vmatpush1.msra.mxu0 0.0
    %697 = vmatprep.subr.mxu0 0.0
    %698 = vmatpush1.msra.mxu0 0.0
    %699 = vmatprep.subr.mxu0 0.0
    %700 = vmatpush1.msra.mxu0 0.0
    %701 = vmatprep.subr.mxu0 0.0
    %702 = vmatpush1.msra.mxu0 0.0
    %703 = vmatprep.subr.mxu0 0.0
    %704 = vmatpush1.msra.mxu0 0.0
    %705 = vmatprep.subr.mxu0 0.0
    %706 = vmatpush1.msra.mxu0 0.0
    %707 = vmatprep.subr.mxu0 0.0
    %708 = vmatpush1.msra.mxu0 0.0
    %709 = vmatprep.subr.mxu0 0.0
    %710 = vmatpush1.msra.mxu0 0.0
    %711 = vmatprep.subr.mxu0 0.0
    %712 = vmatpush1.msra.mxu0 0.0
    %713 = vmatprep.subr.mxu0 0.0
    %714 = vmatpush1.msra.mxu0 0.0
    %715 = vmatprep.mubr.f32.mxu0 0.0
    %716 = vmatmul.mubr.f32.gmra.mrb[0].mxu0 %v579
    %v717 = vpop.f32.mrb[0].mxu0
    %v718 = vadd.f32 %v575, %v717
    %v719 = vpop.f32.mrb[0].mxu0
    %720 = vdwg.mxu0
    %721 = vmatprep.subr.mxu0 0.0
    %722 = vmatpush1.msra.mxu0 %v550
    %723 = vmatprep.subr.mxu0 0.0
    %724 = vmatpush1.msra.mxu0 %v551
    %725 = vmatprep.subr.mxu0 0.0
    %726 = vmatpush1.msra.mxu0 %v552
    %727 = vmatprep.subr.mxu0 0.0
    %728 = vmatpush1.msra.mxu0 %v553
    %729 = vmatprep.subr.mxu0 0.0
    %730 = vmatpush1.msra.mxu0 %v554
    %731 = vmatprep.subr.mxu0 0.0
    %732 = vmatpush1.msra.mxu0 %v555
    %733 = vmatprep.subr.mxu0 0.0
    %734 = vmatpush1.msra.mxu0 %v556
    %735 = vmatprep.subr.mxu0 0.0
    %736 = vmatpush1.msra.mxu0 %v557
    %737 = vmatprep.subr.mxu0 0.0
    %738 = vmatpush1.msra.mxu0 0.0
    %739 = vmatprep.subr.mxu0 0.0
    %740 = vmatpush1.msra.mxu0 0.0
    %741 = vmatprep.subr.mxu0 0.0
    %742 = vmatpush1.msra.mxu0 0.0
    %743 = vmatprep.subr.mxu0 0.0
    %744 = vmatpush1.msra.mxu0 0.0
    %745 = vmatprep.subr.mxu0 0.0
    %746 = vmatpush1.msra.mxu0 0.0
    %747 = vmatprep.subr.mxu0 0.0
    %748 = vmatpush1.msra.mxu0 0.0
    %749 = vmatprep.subr.mxu0 0.0
    %750 = vmatpush1.msra.mxu0 0.0
    %751 = vmatprep.subr.mxu0 0.0
    %752 = vmatpush1.msra.mxu0 0.0
    %753 = vmatprep.subr.mxu0 0.0
    %754 = vmatpush1.msra.mxu0 0.0
    %755 = vmatprep.subr.mxu0 0.0
    %756 = vmatpush1.msra.mxu0 0.0
    %757 = vmatprep.subr.mxu0 0.0
    %758 = vmatpush1.msra.mxu0 0.0
    %759 = vmatprep.subr.mxu0 0.0
    %760 = vmatpush1.msra.mxu0 0.0
    %761 = vmatprep.subr.mxu0 0.0
    %762 = vmatpush1.msra.mxu0 0.0
    %763 = vmatprep.subr.mxu0 0.0
    %764 = vmatpush1.msra.mxu0 0.0
    %765 = vmatprep.subr.mxu0 0.0
    %766 = vmatpush1.msra.mxu0 0.0
    %767 = vmatprep.subr.mxu0 0.0
    %768 = vmatpush1.msra.mxu0 0.0
    %769 = vmatprep.subr.mxu0 0.0
    %770 = vmatpush1.msra.mxu0 0.0
    %771 = vmatprep.subr.mxu0 0.0
    %772 = vmatpush1.msra.mxu0 0.0
    %773 = vmatprep.subr.mxu0 0.0
    %774 = vmatpush1.msra.mxu0 0.0
    %775 = vmatprep.subr.mxu0 0.0
    %776 = vmatpush1.msra.mxu0 0.0
    %777 = vmatprep.subr.mxu0 0.0
    %778 = vmatpush1.msra.mxu0 0.0
    %779 = vmatprep.subr.mxu0 0.0
    %780 = vmatpush1.msra.mxu0 0.0
    %781 = vmatprep.subr.mxu0 0.0
    %782 = vmatpush1.msra.mxu0 0.0
    %783 = vmatprep.subr.mxu0 0.0
    %784 = vmatpush1.msra.mxu0 0.0
    %785 = vmatprep.mubr.f32.mxu0 0.0
    %786 = vmatmul.mubr.f32.gmra.mrb[0].mxu0 %v579
    %v787 = vpop.f32.mrb[0].mxu0
    %v788 = vadd.f32 %v576, %v787
    %v789 = vpop.f32.mrb[0].mxu0
    %790 = vdwg.mxu0
    %v792 = vsel %vm83, %v648, 0
    %v795 = vsel %vm83, %v718, 0
    %797 = vmatprep.subr.mxu0 0.0
    %798 = vmatpush1.xpose.msra.mxu0 %v795
    %799 = vmatprep.subr.mxu0 0.0
    %800 = vmatpush1.xpose.msra.mxu0 0.0
    %801 = vmatprep.subr.mxu0 0.0
    %802 = vmatpush1.xpose.msra.mxu0 0.0
    %803 = vmatprep.subr.mxu0 0.0
    %804 = vmatpush1.xpose.msra.mxu0 0.0
    %805 = vmatprep.subr.mxu0 0.0
    %806 = vmatpush1.xpose.msra.mxu0 0.0
    %807 = vmatprep.subr.mxu0 0.0
    %808 = vmatpush1.xpose.msra.mxu0 0.0
    %809 = vmatprep.subr.mxu0 0.0
    %810 = vmatpush1.xpose.msra.mxu0 0.0
    %811 = vmatprep.subr.mxu0 0.0
    %812 = vmatpush1.xpose.msra.mxu0 0.0
    %813 = vmatprep.subr.mxu0 0.0
    %814 = vmatpush1.xpose.msra.mxu0 0.0
    %815 = vmatprep.subr.mxu0 0.0
    %816 = vmatpush1.xpose.msra.mxu0 0.0
    %817 = vmatprep.subr.mxu0 0.0
    %818 = vmatpush1.xpose.msra.mxu0 0.0
    %819 = vmatprep.subr.mxu0 0.0
    %820 = vmatpush1.xpose.msra.mxu0 0.0
    %821 = vmatprep.subr.mxu0 0.0
    %822 = vmatpush1.xpose.msra.mxu0 0.0
    %823 = vmatprep.subr.mxu0 0.0
    %824 = vmatpush1.xpose.msra.mxu0 0.0
    %825 = vmatprep.subr.mxu0 0.0
    %826 = vmatpush1.xpose.msra.mxu0 0.0
    %827 = vmatprep.subr.mxu0 0.0
    %828 = vmatpush1.xpose.msra.mxu0 0.0
    %829 = vmatprep.subr.mxu0 0.0
    %830 = vmatpush1.xpose.msra.mxu0 0.0
    %831 = vmatprep.subr.mxu0 0.0
    %832 = vmatpush1.xpose.msra.mxu0 0.0
    %833 = vmatprep.subr.mxu0 0.0
    %834 = vmatpush1.xpose.msra.mxu0 0.0
    %835 = vmatprep.subr.mxu0 0.0
    %836 = vmatpush1.xpose.msra.mxu0 0.0
    %837 = vmatprep.subr.mxu0 0.0
    %838 = vmatpush1.xpose.msra.mxu0 0.0
    %839 = vmatprep.subr.mxu0 0.0
    %840 = vmatpush1.xpose.msra.mxu0 0.0
    %841 = vmatprep.subr.mxu0 0.0
    %842 = vmatpush1.xpose.msra.mxu0 0.0
    %843 = vmatprep.subr.mxu0 0.0
    %844 = vmatpush1.xpose.msra.mxu0 0.0
    %845 = vmatprep.subr.mxu0 0.0
    %846 = vmatpush1.xpose.msra.mxu0 0.0
    %847 = vmatprep.subr.mxu0 0.0
    %848 = vmatpush1.xpose.msra.mxu0 0.0
    %849 = vmatprep.subr.mxu0 0.0
    %850 = vmatpush1.xpose.msra.mxu0 0.0
    %851 = vmatprep.subr.mxu0 0.0
    %852 = vmatpush1.xpose.msra.mxu0 0.0
    %853 = vmatprep.subr.mxu0 0.0
    %854 = vmatpush1.xpose.msra.mxu0 0.0
    %855 = vmatprep.subr.mxu0 0.0
    %856 = vmatpush1.xpose.msra.mxu0 0.0
    %857 = vmatprep.subr.mxu0 0.0
    %858 = vmatpush1.xpose.msra.mxu0 0.0
    %859 = vmatprep.subr.mxu0 0.0
    %860 = vmatpush1.xpose.msra.mxu0 0.0
    %861 = vmatprep.mubr.f32.mxu0 0.0
    %862 = vmatmul.mubr.f32.gmra.mrb[0].mxu0 %v792
    %v863 = vpop.f32.mrb[0].mxu0
    %v864 = vadd.f32 0.0, %v863
    %v865 = vpop.f32.mrb[0].mxu0
    %866 = vdwg.mxu0
    %v867 = vsel %vm373, %v864, -inf
    %868 = vmax.xlane.f32.xlu0 %v867
    %v869 = vpop.xlane.xlu0 %868
    %v870 = vsub.f32 %v864, %v869
    %v871 = vmul.f32 %v870, 1.442695
    %v872 = vpow.pop %v871
    %v873 = vsel %vm373, %v872, 0.0
    %874 = vadd.xlane.f32.xlu0 %v873
    %v875 = vpop.xlane.xlu0 %874
    %v876 = vrcp.pop %v875
    %v877 = vmul.f32 %v872, %v876
    %v879 = vsel %vm373, %v877, 0
    %881 = vmatprep.subr.mxu0 0.0
    %882 = vmatpush1.msra.mxu0 %v788
    %883 = vmatprep.subr.mxu0 0.0
    %884 = vmatpush1.msra.mxu0 0.0
    %885 = vmatprep.subr.mxu0 0.0
    %886 = vmatpush1.msra.mxu0 0.0
    %887 = vmatprep.subr.mxu0 0.0
    %888 = vmatpush1.msra.mxu0 0.0
    %889 = vmatprep.subr.mxu0 0.0
    %890 = vmatpush1.msra.mxu0 0.0
    %891 = vmatprep.subr.mxu0 0.0
    %892 = vmatpush1.msra.mxu0 0.0
    %893 = vmatprep.subr.mxu0 0.0
    %894 = vmatpush1.msra.mxu0 0.0
    %895 = vmatprep.subr.mxu0 0.0
    %896 = vmatpush1.msra.mxu0 0.0
    %897 = vmatprep.subr.mxu0 0.0
    %898 = vmatpush1.msra.mxu0 0.0
    %899 = vmatprep.subr.mxu0 0.0
    %900 = vmatpush1.msra.mxu0 0.0
    %901 = vmatprep.subr.mxu0 0.0
    %902 = vmatpush1.msra.mxu0 0.0
    %903 = vmatprep.subr.mxu0 0.0
    %904 = vmatpush1.msra.mxu0 0.0
    %905 = vmatprep.subr.mxu0 0.0
    %906 = vmatpush1.msra.mxu0 0.0
    %907 = vmatprep.subr.mxu0 0.0
    %908 = vmatpush1.msra.mxu0 0.0
    %909 = vmatprep.subr.mxu0 0.0
    %910 = vmatpush1.msra.mxu0 0.0
    %911 = vmatprep.subr.mxu0 0.0
    %912 = vmatpush1.msra.mxu0 0.0
    %913 = vmatprep.subr.mxu0 0.0
    %914 = vmatpush1.msra.mxu0 0.0
    %915 = vmatprep.subr.mxu0 0.0
    %916 = vmatpush1.msra.mxu0 0.0
    %917 = vmatprep.subr.mxu0 0.0
    %918 = vmatpush1.msra.mxu0 0.0
    %919 = vmatprep.subr.mxu0 0.0
    %920 = vmatpush1.msra.mxu0 0.0
    %921 = vmatprep.subr.mxu0 0.0
    %922 = vmatpush1.msra.mxu0 0.0
    %923 = vmatprep.subr.mxu0 0.0
    %924 = vmatpush1.msra.mxu0 0.0
    %925 = vmatprep.subr.mxu0 0.0
    %926 = vmatpush1.msra.mxu0 0.0
    %927 = vmatprep.subr.mxu0 0.0
    %928 = vmatpush1.msra.mxu0 0.0
    %929 = vmatprep.subr.mxu0 0.0
    %930 = vmatpush1.msra.mxu0 0.0
    %931 = vmatprep.subr.mxu0 0.0
    %932 = vmatpush1.msra.mxu0 0.0
    %933 = vmatprep.subr.mxu0 0.0
    %934 = vmatpush1.msra.mxu0 0.0
    %935 = vmatprep.subr.mxu0 0.0
    %936 = vmatpush1.msra.mxu0 0.0
    %937 = vmatprep.subr.mxu0 0.0
    %938 = vmatpush1.msra.mxu0 0.0
    %939 = vmatprep.subr.mxu0 0.0
    %940 = vmatpush1.msra.mxu0 0.0
    %941 = vmatprep.subr.mxu0 0.0
    %942 = vmatpush1.msra.mxu0 0.0
    %943 = vmatprep.subr.mxu0 0.0
    %944 = vmatpush1.msra.mxu0 0.0
    %945 = vmatprep.mubr.f32.mxu0 0.0
    %946 = vmatmul.mubr.f32.gmra.mrb[0].mxu0 %v879
    %v947 = vpop.f32.mrb[0].mxu0
    %v948 = vadd.f32 0.0, %v947
    %v949 = vpop.f32.mrb[0].mxu0
    %950 = vdwg.mxu0
    %952 = vrot.lane.b32.xlu0 %v948, 64
    %v953 = vpop.permute.xlu0 %952
    %v955 = vsel %vm83, %v533, %v953
    %956 = vmatprep.subr.mxu0 0.0
    %957 = vmatpush1.msra.mxu0 %v558
    %958 = vmatprep.subr.mxu0 0.0
    %959 = vmatpush1.msra.mxu0 %v559
    %960 = vmatprep.subr.mxu0 0.0
    %961 = vmatpush1.msra.mxu0 %v560
    %962 = vmatprep.subr.mxu0 0.0
    %963 = vmatpush1.msra.mxu0 %v561
    %964 = vmatprep.subr.mxu0 0.0
    %965 = vmatpush1.msra.mxu0 %v562
    %966 = vmatprep.subr.mxu0 0.0
    %967 = vmatpush1.msra.mxu0 %v563
    %968 = vmatprep.subr.mxu0 0.0
    %969 = vmatpush1.msra.mxu0 %v564
    %970 = vmatprep.subr.mxu0 0.0
    %971 = vmatpush1.msra.mxu0 %v565
    %972 = vmatprep.subr.mxu0 0.0
    %973 = vmatpush1.msra.mxu0 %v566
    %974 = vmatprep.subr.mxu0 0.0
    %975 = vmatpush1.msra.mxu0 %v567
    %976 = vmatprep.subr.mxu0 0.0
    %977 = vmatpush1.msra.mxu0 %v568
    %978 = vmatprep.subr.mxu0 0.0
    %979 = vmatpush1.msra.mxu0 %v569
    %980 = vmatprep.subr.mxu0 0.0
    %981 = vmatpush1.msra.mxu0 %v570
    %982 = vmatprep.subr.mxu0 0.0
    %983 = vmatpush1.msra.mxu0 %v571
    %984 = vmatprep.subr.mxu0 0.0
    %985 = vmatpush1.msra.mxu0 %v572
    %986 = vmatprep.subr.mxu0 0.0
    %987 = vmatpush1.msra.mxu0 %v573
    %988 = vmatprep.subr.mxu0 0.0
    %989 = vmatpush1.msra.mxu0 0.0
    %990 = vmatprep.subr.mxu0 0.0
    %991 = vmatpush1.msra.mxu0 0.0
    %992 = vmatprep.subr.mxu0 0.0
    %993 = vmatpush1.msra.mxu0 0.0
    %994 = vmatprep.subr.mxu0 0.0
    %995 = vmatpush1.msra.mxu0 0.0
    %996 = vmatprep.subr.mxu0 0.0
    %997 = vmatpush1.msra.mxu0 0.0
    %998 = vmatprep.subr.mxu0 0.0
    %999 = vmatpush1.msra.mxu0 0.0
    %1000 = vmatprep.subr.mxu0 0.0
    %1001 = vmatpush1.msra.mxu0 0.0
    %1002 = vmatprep.subr.mxu0 0.0
    %1003 = vmatpush1.msra.mxu0 0.0
    %1004 = vmatprep.subr.mxu0 0.0
    %1005 = vmatpush1.msra.mxu0 0.0
    %1006 = vmatprep.subr.mxu0 0.0
    %1007 = vmatpush1.msra.mxu0 0.0
    %1008 = vmatprep.subr.mxu0 0.0
    %1009 = vmatpush1.msra.mxu0 0.0
    %1010 = vmatprep.subr.mxu0 0.0
    %1011 = vmatpush1.msra.mxu0 0.0
    %1012 = vmatprep.subr.mxu0 0.0
    %1013 = vmatpush1.msra.mxu0 0.0
    %1014 = vmatprep.subr.mxu0 0.0
    %1015 = vmatpush1.msra.mxu0 0.0
    %1016 = vmatprep.subr.mxu0 0.0
    %1017 = vmatpush1.msra.mxu0 0.0
    %1018 = vmatprep.subr.mxu0 0.0
    %1019 = vmatpush1.msra.mxu0 0.0
    %1020 = vmatprep.mubr.f32.mxu0 0.0
    %1021 = vmatmul.mubr.f32.gmra.mrb[0].mxu0 %v955
    %v1022 = vpop.f32.mrb[0].mxu0
    %v1023 = vadd.f32 %v577, %v1022
    %v1024 = vpop.f32.mrb[0].mxu0
    %1025 = vdwg.mxu0
    %v1026 = vmax.f32 %v1023, 0.0
    %v1027 = vld [vmem:[#allocation5 + $0x2c0] sm:$0xff]
    %v1028 = vld [vmem:[#allocation5 + $0x2c8] sm:$0xff]
    %v1029 = vld [vmem:[#allocation5 + $0x2d0] sm:$0xff]
    %v1030 = vld [vmem:[#allocation5 + $0x2d8] sm:$0xff]
    %v1031 = vld [vmem:[#allocation5 + $0x2e0] sm:$0xff]
    %v1032 = vld [vmem:[#allocation5 + $0x2e8] sm:$0xff]
    %v1033 = vld [vmem:[#allocation5 + $0x2f0] sm:$0xff]
    %v1034 = vld [vmem:[#allocation5 + $0x2f8] sm:$0xff]
    %v1035 = vld [vmem:[#allocation5 + $0x300] sm:$0xff]
    %v1036 = vld [vmem:[#allocation5 + $0x308] sm:$0xff]
    %v1037 = vld [vmem:[#allocation5 + $0x310] sm:$0xff]
    %v1038 = vld [vmem:[#allocation5 + $0x318] sm:$0xff]
    %v1039 = vld [vmem:[#allocation5 + $0x320] sm:$0xff]
    %v1040 = vld [vmem:[#allocation5 + $0x328] sm:$0xff]
    %v1041 = vld [vmem:[#allocation5 + $0x330] sm:$0xff]
    %v1042 = vld [vmem:[#allocation5 + $0x338] sm:$0xff]
    %1043 = vmatprep.subr.mxu0 0.0
    %1044 = vmatpush1.msra.mxu0 %v1035
    %1045 = vmatprep.subr.mxu0 0.0
    %1046 = vmatpush1.msra.mxu0 %v1036
    %1047 = vmatprep.subr.mxu0 0.0
    %1048 = vmatpush1.msra.mxu0 %v1037
    %1049 = vmatprep.subr.mxu0 0.0
    %1050 = vmatpush1.msra.mxu0 %v1038
    %1051 = vmatprep.subr.mxu0 0.0
    %1052 = vmatpush1.msra.mxu0 %v1039
    %1053 = vmatprep.subr.mxu0 0.0
    %1054 = vmatpush1.msra.mxu0 %v1040
    %1055 = vmatprep.subr.mxu0 0.0
    %1056 = vmatpush1.msra.mxu0 %v1041
    %1057 = vmatprep.subr.mxu0 0.0
    %1058 = vmatpush1.msra.mxu0 %v1042
    %1059 = vmatprep.subr.mxu0 0.0
    %1060 = vmatpush1.msra.mxu0 0.0
    %1061 = vmatprep.subr.mxu0 0.0
    %1062 = vmatpush1.msra.mxu0 0.0
    %1063 = vmatprep.subr.mxu0 0.0
    %1064 = vmatpush1.msra.mxu0 0.0
    %1065 = vmatprep.subr.mxu0 0.0
    %1066 = vmatpush1.msra.mxu0 0.0
    %1067 = vmatprep.subr.mxu0 0.0
    %1068 = vmatpush1.msra.mxu0 0.0
    %1069 = vmatprep.subr.mxu0 0.0
    %1070 = vmatpush1.msra.mxu0 0.0
    %1071 = vmatprep.subr.mxu0 0.0
    %1072 = vmatpush1.msra.mxu0 0.0
    %1073 = vmatprep.subr.mxu0 0.0
    %1074 = vmatpush1.msra.mxu0 0.0
    %1075 = vmatprep.subr.mxu0 0.0
    %1076 = vmatpush1.msra.mxu0 0.0
    %1077 = vmatprep.subr.mxu0 0.0
    %1078 = vmatpush1.msra.mxu0 0.0
    %1079 = vmatprep.subr.mxu0 0.0
    %1080 = vmatpush1.msra.mxu0 0.0
    %1081 = vmatprep.subr.mxu0 0.0
    %1082 = vmatpush1.msra.mxu0 0.0
    %1083 = vmatprep.subr.mxu0 0.0
    %1084 = vmatpush1.msra.mxu0 0.0
    %1085 = vmatprep.subr.mxu0 0.0
    %1086 = vmatpush1.msra.mxu0 0.0
    %1087 = vmatprep.subr.mxu0 0.0
    %1088 = vmatpush1.msra.mxu0 0.0
    %1089 = vmatprep.subr.mxu0 0.0
    %1090 = vmatpush1.msra.mxu0 0.0
    %1091 = vmatprep.subr.mxu0 0.0
    %1092 = vmatpush1.msra.mxu0 0.0
    %1093 = vmatprep.subr.mxu0 0.0
    %1094 = vmatpush1.msra.mxu0 0.0
    %1095 = vmatprep.subr.mxu0 0.0
    %1096 = vmatpush1.msra.mxu0 0.0
    %1097 = vmatprep.subr.mxu0 0.0
    %1098 = vmatpush1.msra.mxu0 0.0
    %1099 = vmatprep.subr.mxu0 0.0
    %1100 = vmatpush1.msra.mxu0 0.0
    %1101 = vmatprep.subr.mxu0 0.0
    %1102 = vmatpush1.msra.mxu0 0.0
    %1103 = vmatprep.subr.mxu0 0.0
    %1104 = vmatpush1.msra.mxu0 0.0
    %1105 = vmatprep.subr.mxu0 0.0
    %1106 = vmatpush1.msra.mxu0 0.0
    %1107 = vmatprep.mubr.f32.mxu0 0.0
    %1108 = vmatmul.mubr.f32.gmra.mrb[0].mxu0 %v579
    %v1109 = vpop.f32.mrb[0].mxu0
    %v1110 = vadd.f32 0.0, %v1109
    %v1111 = vpop.f32.mrb[0].mxu0
    %1112 = vdwg.mxu0
    %1113 = vmatprep.subr.mxu0 0.0
    %1114 = vmatpush1.msra.mxu0 %v1027
    %1115 = vmatprep.subr.mxu0 0.0
    %1116 = vmatpush1.msra.mxu0 %v1028
    %1117 = vmatprep.subr.mxu0 0.0
    %1118 = vmatpush1.msra.mxu0 %v1029
    %1119 = vmatprep.subr.mxu0 0.0
    %1120 = vmatpush1.msra.mxu0 %v1030
    %1121 = vmatprep.subr.mxu0 0.0
    %1122 = vmatpush1.msra.mxu0 %v1031
    %1123 = vmatprep.subr.mxu0 0.0
    %1124 = vmatpush1.msra.mxu0 %v1032
    %1125 = vmatprep.subr.mxu0 0.0
    %1126 = vmatpush1.msra.mxu0 %v1033
    %1127 = vmatprep.subr.mxu0 0.0
    %1128 = vmatpush1.msra.mxu0 %v1034
    %1129 = vmatprep.subr.mxu0 0.0
    %1130 = vmatpush1.msra.mxu0 0.0
    %1131 = vmatprep.subr.mxu0 0.0
    %1132 = vmatpush1.msra.mxu0 0.0
    %1133 = vmatprep.subr.mxu0 0.0
    %1134 = vmatpush1.msra.mxu0 0.0
    %1135 = vmatprep.subr.mxu0 0.0
    %1136 = vmatpush1.msra.mxu0 0.0
    %1137 = vmatprep.subr.mxu0 0.0
    %1138 = vmatpush1.msra.mxu0 0.0
    %1139 = vmatprep.subr.mxu0 0.0
    %1140 = vmatpush1.msra.mxu0 0.0
    %1141 = vmatprep.subr.mxu0 0.0
    %1142 = vmatpush1.msra.mxu0 0.0
    %1143 = vmatprep.subr.mxu0 0.0
    %1144 = vmatpush1.msra.mxu0 0.0
    %1145 = vmatprep.subr.mxu0 0.0
    %1146 = vmatpush1.msra.mxu0 0.0
    %1147 = vmatprep.subr.mxu0 0.0
    %1148 = vmatpush1.msra.mxu0 0.0
    %1149 = vmatprep.subr.mxu0 0.0
    %1150 = vmatpush1.msra.mxu0 0.0
    %1151 = vmatprep.subr.mxu0 0.0
    %1152 = vmatpush1.msra.mxu0 0.0
    %1153 = vmatprep.subr.mxu0 0.0
    %1154 = vmatpush1.msra.mxu0 0.0
    %1155 = vmatprep.subr.mxu0 0.0
    %1156 = vmatpush1.msra.mxu0 0.0
    %1157 = vmatprep.subr.mxu0 0.0
    %1158 = vmatpush1.msra.mxu0 0.0
    %1159 = vmatprep.subr.mxu0 0.0
    %1160 = vmatpush1.msra.mxu0 0.0
    %1161 = vmatprep.subr.mxu0 0.0
    %1162 = vmatpush1.msra.mxu0 0.0
    %1163 = vmatprep.subr.mxu0 0.0
    %1164 = vmatpush1.msra.mxu0 0.0
    %1165 = vmatprep.subr.mxu0 0.0
    %1166 = vmatpush1.msra.mxu0 0.0
    %1167 = vmatprep.subr.mxu0 0.0
    %1168 = vmatpush1.msra.mxu0 0.0
    %1169 = vmatprep.subr.mxu0 0.0
    %1170 = vmatpush1.msra.mxu0 0.0
    %1171 = vmatprep.subr.mxu0 0.0
    %1172 = vmatpush1.msra.mxu0 0.0
    %1173 = vmatprep.subr.mxu0 0.0
    %1174 = vmatpush1.msra.mxu0 0.0
    %1175 = vmatprep.subr.mxu0 0.0
    %1176 = vmatpush1.msra.mxu0 0.0
    %1177 = vmatprep.mubr.f32.mxu0 0.0
    %1178 = vmatmul.mubr.f32.gmra.mrb[0].mxu0 %v85
    %v1179 = vpop.f32.mrb[0].mxu0
    %v1180 = vadd.f32 %v1110, %v1179
    %v1181 = vpop.f32.mrb[0].mxu0
    %1182 = vdwg.mxu0
    %v1183 = vld [vmem:[#allocation5 + $0x340] sm:$0xff]
    %v1184 = vld [vmem:[#allocation5 + $0x348] sm:$0xff]
    %v1185 = vld [vmem:[#allocation5 + $0x350] sm:$0xff]
    %v1186 = vld [vmem:[#allocation5 + $0x358] sm:$0xff]
    %v1187 = vld [vmem:[#allocation5 + $0x360] sm:$0xff]
    %v1188 = vld [vmem:[#allocation5 + $0x368] sm:$0xff]
    %v1189 = vld [vmem:[#allocation5 + $0x370] sm:$0xff]
    %v1190 = vld [vmem:[#allocation5 + $0x378] sm:$0xff]
    %v1192 = vsel %vm83, %v1026, 0
    %1194 = vmatprep.subr.mxu0 0.0
    %1195 = vmatpush1.msra.mxu0 %v1183
    %1196 = vmatprep.subr.mxu0 0.0
    %1197 = vmatpush1.msra.mxu0 %v1184
    %1198 = vmatprep.subr.mxu0 0.0
    %1199 = vmatpush1.msra.mxu0 %v1185
    %1200 = vmatprep.subr.mxu0 0.0
    %1201 = vmatpush1.msra.mxu0 %v1186
    %1202 = vmatprep.subr.mxu0 0.0
    %1203 = vmatpush1.msra.mxu0 %v1187
    %1204 = vmatprep.subr.mxu0 0.0
    %1205 = vmatpush1.msra.mxu0 %v1188
    %1206 = vmatprep.subr.mxu0 0.0
    %1207 = vmatpush1.msra.mxu0 %v1189
    %1208 = vmatprep.subr.mxu0 0.0
    %1209 = vmatpush1.msra.mxu0 %v1190
    %1210 = vmatprep.subr.mxu0 0.0
    %1211 = vmatpush1.msra.mxu0 0.0
    %1212 = vmatprep.subr.mxu0 0.0
    %1213 = vmatpush1.msra.mxu0 0.0
    %1214 = vmatprep.subr.mxu0 0.0
    %1215 = vmatpush1.msra.mxu0 0.0
    %1216 = vmatprep.subr.mxu0 0.0
    %1217 = vmatpush1.msra.mxu0 0.0
    %1218 = vmatprep.subr.mxu0 0.0
    %1219 = vmatpush1.msra.mxu0 0.0
    %1220 = vmatprep.subr.mxu0 0.0
    %1221 = vmatpush1.msra.mxu0 0.0
    %1222 = vmatprep.subr.mxu0 0.0
    %1223 = vmatpush1.msra.mxu0 0.0
    %1224 = vmatprep.subr.mxu0 0.0
    %1225 = vmatpush1.msra.mxu0 0.0
    %1226 = vmatprep.subr.mxu0 0.0
    %1227 = vmatpush1.msra.mxu0 0.0
    %1228 = vmatprep.subr.mxu0 0.0
    %1229 = vmatpush1.msra.mxu0 0.0
    %1230 = vmatprep.subr.mxu0 0.0
    %1231 = vmatpush1.msra.mxu0 0.0
    %1232 = vmatprep.subr.mxu0 0.0
    %1233 = vmatpush1.msra.mxu0 0.0
    %1234 = vmatprep.subr.mxu0 0.0
    %1235 = vmatpush1.msra.mxu0 0.0
    %1236 = vmatprep.subr.mxu0 0.0
    %1237 = vmatpush1.msra.mxu0 0.0
    %1238 = vmatprep.subr.mxu0 0.0
    %1239 = vmatpush1.msra.mxu0 0.0
    %1240 = vmatprep.subr.mxu0 0.0
    %1241 = vmatpush1.msra.mxu0 0.0
    %1242 = vmatprep.subr.mxu0 0.0
    %1243 = vmatpush1.msra.mxu0 0.0
    %1244 = vmatprep.subr.mxu0 0.0
    %1245 = vmatpush1.msra.mxu0 0.0
    %1246 = vmatprep.subr.mxu0 0.0
    %1247 = vmatpush1.msra.mxu0 0.0
    %1248 = vmatprep.subr.mxu0 0.0
    %1249 = vmatpush1.msra.mxu0 0.0
    %1250 = vmatprep.subr.mxu0 0.0
    %1251 = vmatpush1.msra.mxu0 0.0
    %1252 = vmatprep.subr.mxu0 0.0
    %1253 = vmatpush1.msra.mxu0 0.0
    %1254 = vmatprep.subr.mxu0 0.0
    %1255 = vmatpush1.msra.mxu0 0.0
    %1256 = vmatprep.subr.mxu0 0.0
    %1257 = vmatpush1.msra.mxu0 0.0
    %1258 = vmatprep.mubr.f32.mxu0 0.0
    %1259 = vmatmul.mubr.f32.gmra.mrb[0].mxu0 %v1192
    %v1260 = vpop.f32.mrb[0].mxu0
    %v1261 = vadd.f32 0.0, %v1260
    %v1262 = vpop.f32.mrb[0].mxu0
    %1263 = vdwg.mxu0
    %v1264 = vadd.f32 %v1180, %v1261
    %v1265 = vld [vmem:[#allocation5 + $0x400] sm:$0xff]
    %v1266 = vadd.f32 %v1264, %v1265
    %v1267 = vmax.f32 %v1266, 0.0
    %v1268 = vld [vmem:[#allocation5 + $0x380] sm:$0xff]
    %v1269 = vld [vmem:[#allocation5 + $0x388] sm:$0xff]
    %v1270 = vld [vmem:[#allocation5 + $0x390] sm:$0xff]
    %v1271 = vld [vmem:[#allocation5 + $0x398] sm:$0xff]
    %v1272 = vld [vmem:[#allocation5 + $0x3a0] sm:$0xff]
    %v1273 = vld [vmem:[#allocation5 + $0x3a8] sm:$0xff]
    %v1274 = vld [vmem:[#allocation5 + $0x3b0] sm:$0xff]
    %v1275 = vld [vmem:[#allocation5 + $0x3b8] sm:$0xff]
    %v1276 = vld [vmem:[#allocation5 + $0x3c0] sm:$0xff]
    %v1277 = vld [vmem:[#allocation5 + $0x3c8] sm:$0xff]
    %v1278 = vld [vmem:[#allocation5 + $0x3d0] sm:$0xff]
    %v1279 = vld [vmem:[#allocation5 + $0x3d8] sm:$0xff]
    %v1280 = vld [vmem:[#allocation5 + $0x3e0] sm:$0xff]
    %v1281 = vld [vmem:[#allocation5 + $0x3e8] sm:$0xff]
    %v1282 = vld [vmem:[#allocation5 + $0x3f0] sm:$0xff]
    %v1283 = vld [vmem:[#allocation5 + $0x3f8] sm:$0xff]
    %v1284 = vld [vmem:[#allocation5 + $0x408] sm:$0xff]
    %1285 = vmatprep.subr.mxu0 0.0
    %1286 = vmatpush1.msra.mxu0 %v1268
    %1287 = vmatprep.subr.mxu0 0.0
    %1288 = vmatpush1.msra.mxu0 %v1269
    %1289 = vmatprep.subr.mxu0 0.0
    %1290 = vmatpush1.msra.mxu0 %v1270
    %1291 = vmatprep.subr.mxu0 0.0
    %1292 = vmatpush1.msra.mxu0 %v1271
    %1293 = vmatprep.subr.mxu0 0.0
    %1294 = vmatpush1.msra.mxu0 %v1272
    %1295 = vmatprep.subr.mxu0 0.0
    %1296 = vmatpush1.msra.mxu0 %v1273
    %1297 = vmatprep.subr.mxu0 0.0
    %1298 = vmatpush1.msra.mxu0 %v1274
    %1299 = vmatprep.subr.mxu0 0.0
    %1300 = vmatpush1.msra.mxu0 %v1275
    %1301 = vmatprep.subr.mxu0 0.0
    %1302 = vmatpush1.msra.mxu0 %v1276
    %1303 = vmatprep.subr.mxu0 0.0
    %1304 = vmatpush1.msra.mxu0 %v1277
    %1305 = vmatprep.subr.mxu0 0.0
    %1306 = vmatpush1.msra.mxu0 %v1278
    %1307 = vmatprep.subr.mxu0 0.0
    %1308 = vmatpush1.msra.mxu0 %v1279
    %1309 = vmatprep.subr.mxu0 0.0
    %1310 = vmatpush1.msra.mxu0 %v1280
    %1311 = vmatprep.subr.mxu0 0.0
    %1312 = vmatpush1.msra.mxu0 %v1281
    %1313 = vmatprep.subr.mxu0 0.0
    %1314 = vmatpush1.msra.mxu0 %v1282
    %1315 = vmatprep.subr.mxu0 0.0
    %1316 = vmatpush1.msra.mxu0 %v1283
    %1317 = vmatprep.subr.mxu0 0.0
    %1318 = vmatpush1.msra.mxu0 0.0
    %1319 = vmatprep.subr.mxu0 0.0
    %1320 = vmatpush1.msra.mxu0 0.0
    %1321 = vmatprep.subr.mxu0 0.0
    %1322 = vmatpush1.msra.mxu0 0.0
    %1323 = vmatprep.subr.mxu0 0.0
    %1324 = vmatpush1.msra.mxu0 0.0
    %1325 = vmatprep.subr.mxu0 0.0
    %1326 = vmatpush1.msra.mxu0 0.0
    %1327 = vmatprep.subr.mxu0 0.0
    %1328 = vmatpush1.msra.mxu0 0.0
    %1329 = vmatprep.subr.mxu0 0.0
    %1330 = vmatpush1.msra.mxu0 0.0
    %1331 = vmatprep.subr.mxu0 0.0
    %1332 = vmatpush1.msra.mxu0 0.0
    %1333 = vmatprep.subr.mxu0 0.0
    %1334 = vmatpush1.msra.mxu0 0.0
    %1335 = vmatprep.subr.mxu0 0.0
    %1336 = vmatpush1.msra.mxu0 0.0
    %1337 = vmatprep.subr.mxu0 0.0
    %1338 = vmatpush1.msra.mxu0 0.0
    %1339 = vmatprep.subr.mxu0 0.0
    %1340 = vmatpush1.msra.mxu0 0.0
    %1341 = vmatprep.subr.mxu0 0.0
    %1342 = vmatpush1.msra.mxu0 0.0
    %1343 = vmatprep.subr.mxu0 0.0
    %1344 = vmatpush1.msra.mxu0 0.0
    %1345 = vmatprep.subr.mxu0 0.0
    %1346 = vmatpush1.msra.mxu0 0.0
    %1347 = vmatprep.subr.mxu0 0.0
    %1348 = vmatpush1.msra.mxu0 0.0
    %1349 = vmatprep.mubr.f32.mxu0 0.0
    %1350 = vmatmul.mubr.f32.gmra.mrb[0].mxu0 %v1267
    %v1351 = vpop.f32.mrb[0].mxu0
    %v1352 = vadd.f32 %v1284, %v1351
    %v1353 = vpop.f32.mrb[0].mxu0
    %1354 = vdwg.mxu0
    %vm1355 = vcmask 80896
    %v1356 = vsel %vm1355, %v1352, -inf
    %1357 = vmax.xlane.f32.xlu0 %v1356
    %v1358 = vpop.xlane.xlu0 %1357
    %v1359 = vsub.f32 %v1352, %v1358
    %v1360 = vmul.f32 %v1359, 1.442695
    %v1361 = vpow.pop %v1360
    %v1362 = vsel %vm1355, %v1361, 0.0
    %1363 = vadd.xlane.f32.xlu0 %v1362
    %v1364 = vpop.xlane.xlu0 %1363
    %v1365 = vmul.f32 %v1364, 0.1
    %vm1366 = vcmp.ge.f32.partialorder %v1361, %v1365
    %v1367 = vsel %vm1366, 1.0, 0.0
    %1368 = vst.msk [vmem:[#allocation7] sm:$0xff] %vm1355, %v1367
    // Predicated region
    $region18: #{adjacency_net.1} parent=1 // pred_check
      _
    $region19: #{adjacency_net.1} parent=1 // pred_check_branch
      %1370 = sbr.rel (0) target = $region21
    $region20: #{adjacency_net.1} parent=1 // pred_region
      %s1372 = ssub.s32 128, 128
      %1373 = vsyncadd [#allocation4], %s1372
      %s1375 = sshll.u32 [#allocation7], 4
      %s1376 = int_to_ptr.vmem [resolvable:$true] %s1375
      %1378 = dma.vmem_to_hbm [thread:$0]  %s1376, 128, %s2, [#allocation4]
    $region21: #{adjacency_net.1} parent=1 // pred_fallthru
      _
    // Predicated region
    $region22: #{adjacency_net.1} parent=1 // pred_check
      _
    $region23: #{adjacency_net.1} parent=1 // pred_check_branch
      %1380 = sbr.rel (0) target = $region25
    $region24: #{adjacency_net.1} parent=1 // pred_region
      %1381 = dma.done [#allocation4], 128
    $region25: #{adjacency_net.1} parent=1 // pred_fallthru
      _
    %1382 = vsyncpa [#allocation3], 1
    %1383 = vsyncpa [#allocation6], 1
    %1384 = vsyncpa [#allocation4], 1

</llo_original>
